<compile_context>
chip_gen: v7x
topology: tpu7x:2x2x1
jax: 0.10.0
libtpu: 0.0.40
codegen_flags: <defaults>
</compile_context>

<pallas_src>
from functools import partial

import jax
import jax.numpy as jnp
import numpy as np
from jax.experimental import pallas as pl
from jax.experimental.pallas import tpu as pltpu

IMAGE_SIZE = 24
EPS = 1e-5


# --------------------------------------------------------------------------
# Fused kernel: (conv3x3 -> BN -> ReLU) x 2, whole batch, no grid.
# --------------------------------------------------------------------------
def _fused_two_conv_kernel(x_ref, m_ref, w1_ref, g1_ref, be1_ref,
                           w2_ref, g2_ref, be2_ref, o_ref, *, width):
    # x_ref : (Cin_pad, NHW)   lane-dense channel-major input
    # m_ref : (9, 1, NHW)      per-tap 0/1 boundary masks (shared by layers)
    # w*_ref: (Cout_pad, 9*Cin_pad) folded tap-major conv weights
    # g*/be*: (Cout_pad, 1)    BN gamma / beta
    # o_ref : (Cout_pad, NHW)  layer-2 BN+ReLU output, lane-dense
    nhw = x_ref.shape[1]
    inv_cnt = jnp.float32(1.0 / nhw)

    def conv3x3(xa, wmat_ref):
        # 3x3 "same" conv: gather the 9 taps with lane rolls + boundary masks,
        # stack along sublanes, and contract in a single MXU matmul.
        taps = []
        k = 0
        for dy in (-1, 0, 1):
            for dx in (-1, 0, 1):
                s = dy * width + dx                       # tap offset in lanes
                t = xa if s == 0 else pltpu.roll(xa, (-s) % nhw, axis=1)
                taps.append(t * m_ref[k])                 # zero out-of-image taps
                k += 1
        cols = jnp.concatenate(taps, axis=0)              # (9*C_pad, NHW)
        return jnp.dot(wmat_ref[...], cols,
                       preferred_element_type=jnp.float32)

    def bn_relu(y, g_ref, be_ref):
        # Training-mode BatchNorm: biased batch stats over (N,H,W) per channel,
        # two-pass (centered) variance, affine, ReLU.
        mean = jnp.sum(y, axis=1, keepdims=True) * inv_cnt
        yc = y - mean
        var = jnp.sum(yc * yc, axis=1, keepdims=True) * inv_cnt
        scale = g_ref[...] * jax.lax.rsqrt(var + EPS)
        return jnp.maximum(yc * scale + be_ref[...], 0.0)

    z1 = bn_relu(conv3x3(x_ref[...], w1_ref), g1_ref, be1_ref)   # stays on-chip
    o_ref[...] = bn_relu(conv3x3(z1, w2_ref), g2_ref, be2_ref)


# --------------------------------------------------------------------------
# Wrapper-side layout plumbing (tiny, weight/mask prep only).
# --------------------------------------------------------------------------
def _round_up(v, m):
    return (v + m - 1) // m * m


def _tap_masks(n, h, w):
    # Static numpy constant: validity mask per (dy, dx) tap, shape (9,1,N*H*W).
    hw = h * w
    p = np.arange(n * hw)
    row = (p % hw) // w
    col = p % w
    ms = []
    for dy in (-1, 0, 1):
        for dx in (-1, 0, 1):
            ok = ((row + dy >= 0) & (row + dy < h) &
                  (col + dx >= 0) & (col + dx < w))
            ms.append(ok.astype(np.float32))
    return jnp.asarray(np.stack(ms)[:, None, :])


def _fold_weight(w, cout_pad, cin_pad):
    # (3,3,Cin,Cout) HWIO -> (cout_pad, 9*cin_pad); tap-major (ky,kx) columns,
    # each tap's Cin block zero-padded to cin_pad (matches in-kernel cols).
    _, _, cin, cout = w.shape
    wt = jnp.transpose(w.astype(jnp.float32), (3, 0, 1, 2))      # (Cout,3,3,Cin)
    wt = jnp.pad(wt, ((0, cout_pad - cout), (0, 0), (0, 0), (0, cin_pad - cin)))
    return wt.reshape(cout_pad, 9 * cin_pad)


def _col(v, cpad):
    v = v.astype(jnp.float32)
    return jnp.pad(v, (0, cpad - v.shape[0]))[:, None]           # (cpad, 1)


def two_conv_block(x, params, *, channel_major_out=False):
    # x: (N, Cin, H, W) f32 -> (N, Cout, H, W) f32 (or (Cout,N,H,W) if
    # channel_major_out=True, skipping the final transpose HLO entirely).
    n, cin, h, w = x.shape
    cout = params["w1"].shape[3]
    nhw = n * h * w
    cin_pad = max(8, _round_up(cin, 8))
    cpad = max(8, _round_up(cout, 8))

    # lane-dense channel-major input (Cin_pad, N*H*W)
    xcm = jnp.transpose(x.astype(jnp.float32), (1, 0, 2, 3)).reshape(cin, nhw)
    xcm = jnp.pad(xcm, ((0, cin_pad - cin), (0, 0)))

    masks = _tap_masks(n, h, w)
    w1m = _fold_weight(params["w1"], cpad, cin_pad)
    w2m = _fold_weight(params["w2"], cpad, cpad)
    g1, be1 = _col(params["g1"], cpad), _col(params["be1"], cpad)
    g2, be2 = _col(params["g2"], cpad), _col(params["be2"], cpad)
    # Conv biases b1/b2 are intentionally NOT passed: training-mode BN's mean
    # subtraction cancels any per-channel bias exactly.

    z2 = pl.pallas_call(
        partial(_fused_two_conv_kernel, width=w),
        out_shape=jax.ShapeDtypeStruct((cpad, nhw), jnp.float32),
        in_specs=[pl.BlockSpec(memory_space=pltpu.MemorySpace.VMEM)] * 8,
        out_specs=pl.BlockSpec(memory_space=pltpu.MemorySpace.VMEM),
    )(xcm, masks, w1m, g1, be1, w2m, g2, be2)

    z2 = z2[:cout].reshape(cout, n, h, w)
    if channel_major_out:
        return z2
    return jnp.transpose(z2, (1, 0, 2, 3))


# --------------------------------------------------------------------------
# Pure-JAX reference (keeps the conv bias, as nn.Conv2d does by default).
# --------------------------------------------------------------------------
def ref_two_conv_block(x, params):
    def conv(x, w, b):
        y = jax.lax.conv_general_dilated(
            x, w, window_strides=(1, 1), padding="SAME",
            dimension_numbers=("NCHW", "HWIO", "NCHW"),
            precision=jax.lax.Precision.HIGHEST)
        return y + b[None, :, None, None]

    def bnr(y, g, be):
        mean = y.mean(axis=(0, 2, 3))
        var = y.var(axis=(0, 2, 3))
        yhat = (y - mean[None, :, None, None]) * jax.lax.rsqrt(
            var[None, :, None, None] + EPS)
        return jnp.maximum(yhat * g[None, :, None, None]
                           + be[None, :, None, None], 0.0)

    z1 = bnr(conv(x, params["w1"], params["b1"]), params["g1"], params["be1"])
    return bnr(conv(z1, params["w2"], params["b2"]), params["g2"], params["be2"])


def init_params(key, cin, cout):
    ks = jax.random.split(key, 8)
    k1 = 1.0 / np.sqrt(cin * 9.0)
    k2 = 1.0 / np.sqrt(cout * 9.0)
    return dict(
        w1=jax.random.uniform(ks[0], (3, 3, cin, cout), jnp.float32, -k1, k1),
        b1=jax.random.uniform(ks[1], (cout,), jnp.float32, -k1, k1),
        w2=jax.random.uniform(ks[2], (3, 3, cout, cout), jnp.float32, -k2, k2),
        b2=jax.random.uniform(ks[3], (cout,), jnp.float32, -k2, k2),
        g1=(1.0 + 0.1 * jax.random.normal(ks[4], (cout,))).astype(jnp.float32),
        be1=(0.1 * jax.random.normal(ks[5], (cout,))).astype(jnp.float32),
        g2=(1.0 + 0.1 * jax.random.normal(ks[6], (cout,))).astype(jnp.float32),
        be2=(0.1 * jax.random.normal(ks[7], (cout,))).astype(jnp.float32),
    )


if __name__ == "__main__":
    key = jax.random.PRNGKey(0)
    kx, kp = jax.random.split(key)

    N, CIN, COUT = 2, 2, 4
    H = W = IMAGE_SIZE  # 24, matching x.resize_(1, 2, IMAGE_SIZE, IMAGE_SIZE)

    x = jax.random.normal(kx, (N, CIN, H, W), jnp.float32)
    params = init_params(kp, CIN, COUT)

    out = jax.jit(two_conv_block)(x, params)
    out = jax.block_until_ready(out)

    ref = ref_two_conv_block(x, params)
    np.testing.assert_allclose(np.asarray(out), np.asarray(ref),
                               rtol=2e-3, atol=2e-3)
    print("KERNEL_OK")
</pallas_src>

<mosaic_0001>
module attributes {stable_mosaic.version = 11 : i64} {
  func.func @_fused_two_conv_kernel(%arg0: memref<8x1152xf32, #tpu.memory_space<vmem>>, %arg1: memref<9x1x1152xf32, #tpu.memory_space<vmem>>, %arg2: memref<8x72xf32, #tpu.memory_space<vmem>>, %arg3: memref<8x1xf32, #tpu.memory_space<vmem>>, %arg4: memref<8x1xf32, #tpu.memory_space<vmem>>, %arg5: memref<8x72xf32, #tpu.memory_space<vmem>>, %arg6: memref<8x1xf32, #tpu.memory_space<vmem>>, %arg7: memref<8x1xf32, #tpu.memory_space<vmem>>, %arg8: memref<8x1152xf32, #tpu.memory_space<vmem>>) attributes {dimension_semantics = [], scalar_prefetch = 0 : i64, scratch_operands = 0 : i64, tpu.core_type = #tpu.core_type<tc>} {
    %c0 = arith.constant 0 : index
    %c0_0 = arith.constant 0 : index
    %0 = vector.load %arg0[%c0, %c0_0] : memref<8x1152xf32, #tpu.memory_space<vmem>>, vector<8x1152xf32>
    %c25_i32 = arith.constant 25 : i32
    %1 = tpu.dynamic_rotate %0 by %c25_i32 dim 1 : vector<8x1152xf32>, i32 -> vector<8x1152xf32>
    %c0_1 = arith.constant 0 : index
    %c0_2 = arith.constant 0 : index
    %c0_3 = arith.constant 0 : index
    %2 = vector.load %arg1[%c0_1, %c0_2, %c0_3] : memref<9x1x1152xf32, #tpu.memory_space<vmem>>, vector<1x1x1152xf32>
    %3 = vector.shape_cast %2 : vector<1x1x1152xf32> to vector<1x1152xf32>
    %4 = vector.broadcast %3 : vector<1x1152xf32> to vector<8x1152xf32>
    %5 = arith.mulf %1, %4 : vector<8x1152xf32>
    %c24_i32 = arith.constant 24 : i32
    %6 = tpu.dynamic_rotate %0 by %c24_i32 dim 1 : vector<8x1152xf32>, i32 -> vector<8x1152xf32>
    %c1 = arith.constant 1 : index
    %c0_4 = arith.constant 0 : index
    %c0_5 = arith.constant 0 : index
    %7 = vector.load %arg1[%c1, %c0_4, %c0_5] : memref<9x1x1152xf32, #tpu.memory_space<vmem>>, vector<1x1x1152xf32>
    %8 = vector.shape_cast %7 : vector<1x1x1152xf32> to vector<1x1152xf32>
    %9 = vector.broadcast %8 : vector<1x1152xf32> to vector<8x1152xf32>
    %10 = arith.mulf %6, %9 : vector<8x1152xf32>
    %c23_i32 = arith.constant 23 : i32
    %11 = tpu.dynamic_rotate %0 by %c23_i32 dim 1 : vector<8x1152xf32>, i32 -> vector<8x1152xf32>
    %c2 = arith.constant 2 : index
    %c0_6 = arith.constant 0 : index
    %c0_7 = arith.constant 0 : index
    %12 = vector.load %arg1[%c2, %c0_6, %c0_7] : memref<9x1x1152xf32, #tpu.memory_space<vmem>>, vector<1x1x1152xf32>
    %13 = vector.shape_cast %12 : vector<1x1x1152xf32> to vector<1x1152xf32>
    %14 = vector.broadcast %13 : vector<1x1152xf32> to vector<8x1152xf32>
    %15 = arith.mulf %11, %14 : vector<8x1152xf32>
    %c1_i32 = arith.constant 1 : i32
    %16 = tpu.dynamic_rotate %0 by %c1_i32 dim 1 : vector<8x1152xf32>, i32 -> vector<8x1152xf32>
    %c3 = arith.constant 3 : index
    %c0_8 = arith.constant 0 : index
    %c0_9 = arith.constant 0 : index
    %17 = vector.load %arg1[%c3, %c0_8, %c0_9] : memref<9x1x1152xf32, #tpu.memory_space<vmem>>, vector<1x1x1152xf32>
    %18 = vector.shape_cast %17 : vector<1x1x1152xf32> to vector<1x1152xf32>
    %19 = vector.broadcast %18 : vector<1x1152xf32> to vector<8x1152xf32>
    %20 = arith.mulf %16, %19 : vector<8x1152xf32>
    %c4 = arith.constant 4 : index
    %c0_10 = arith.constant 0 : index
    %c0_11 = arith.constant 0 : index
    %21 = vector.load %arg1[%c4, %c0_10, %c0_11] : memref<9x1x1152xf32, #tpu.memory_space<vmem>>, vector<1x1x1152xf32>
    %22 = vector.shape_cast %21 : vector<1x1x1152xf32> to vector<1x1152xf32>
    %23 = vector.broadcast %22 : vector<1x1152xf32> to vector<8x1152xf32>
    %24 = arith.mulf %0, %23 : vector<8x1152xf32>
    %c1151_i32 = arith.constant 1151 : i32
    %25 = tpu.dynamic_rotate %0 by %c1151_i32 dim 1 : vector<8x1152xf32>, i32 -> vector<8x1152xf32>
    %c5 = arith.constant 5 : index
    %c0_12 = arith.constant 0 : index
    %c0_13 = arith.constant 0 : index
    %26 = vector.load %arg1[%c5, %c0_12, %c0_13] : memref<9x1x1152xf32, #tpu.memory_space<vmem>>, vector<1x1x1152xf32>
    %27 = vector.shape_cast %26 : vector<1x1x1152xf32> to vector<1x1152xf32>
    %28 = vector.broadcast %27 : vector<1x1152xf32> to vector<8x1152xf32>
    %29 = arith.mulf %25, %28 : vector<8x1152xf32>
    %c1129_i32 = arith.constant 1129 : i32
    %30 = tpu.dynamic_rotate %0 by %c1129_i32 dim 1 : vector<8x1152xf32>, i32 -> vector<8x1152xf32>
    %c6 = arith.constant 6 : index
    %c0_14 = arith.constant 0 : index
    %c0_15 = arith.constant 0 : index
    %31 = vector.load %arg1[%c6, %c0_14, %c0_15] : memref<9x1x1152xf32, #tpu.memory_space<vmem>>, vector<1x1x1152xf32>
    %32 = vector.shape_cast %31 : vector<1x1x1152xf32> to vector<1x1152xf32>
    %33 = vector.broadcast %32 : vector<1x1152xf32> to vector<8x1152xf32>
    %34 = arith.mulf %30, %33 : vector<8x1152xf32>
    %c1128_i32 = arith.constant 1128 : i32
    %35 = tpu.dynamic_rotate %0 by %c1128_i32 dim 1 : vector<8x1152xf32>, i32 -> vector<8x1152xf32>
    %c7 = arith.constant 7 : index
    %c0_16 = arith.constant 0 : index
    %c0_17 = arith.constant 0 : index
    %36 = vector.load %arg1[%c7, %c0_16, %c0_17] : memref<9x1x1152xf32, #tpu.memory_space<vmem>>, vector<1x1x1152xf32>
    %37 = vector.shape_cast %36 : vector<1x1x1152xf32> to vector<1x1152xf32>
    %38 = vector.broadcast %37 : vector<1x1152xf32> to vector<8x1152xf32>
    %39 = arith.mulf %35, %38 : vector<8x1152xf32>
    %c1127_i32 = arith.constant 1127 : i32
    %40 = tpu.dynamic_rotate %0 by %c1127_i32 dim 1 : vector<8x1152xf32>, i32 -> vector<8x1152xf32>
    %c8 = arith.constant 8 : index
    %c0_18 = arith.constant 0 : index
    %c0_19 = arith.constant 0 : index
    %41 = vector.load %arg1[%c8, %c0_18, %c0_19] : memref<9x1x1152xf32, #tpu.memory_space<vmem>>, vector<1x1x1152xf32>
    %42 = vector.shape_cast %41 : vector<1x1x1152xf32> to vector<1x1152xf32>
    %43 = vector.broadcast %42 : vector<1x1152xf32> to vector<8x1152xf32>
    %44 = arith.mulf %40, %43 : vector<8x1152xf32>
    %45 = tpu.concatenate %5, %10, %15, %20, %24, %29, %34, %39, %44 in 0 : vector<8x1152xf32>, vector<8x1152xf32>, vector<8x1152xf32>, vector<8x1152xf32>, vector<8x1152xf32>, vector<8x1152xf32>, vector<8x1152xf32>, vector<8x1152xf32>, vector<8x1152xf32> -> vector<72x1152xf32>
    %c0_20 = arith.constant 0 : index
    %c0_21 = arith.constant 0 : index
    %46 = vector.load %arg2[%c0_20, %c0_21] : memref<8x72xf32, #tpu.memory_space<vmem>>, vector<8x72xf32>
    %cst = arith.constant dense<0.000000e+00> : vector<8x1152xf32>
    %47 = tpu.matmul %46, %45, %cst {dimension_numbers = #tpu.dot_dimension_numbers<[1], [0], [0], [1], [0, 0, 1, 1], [], []>} : vector<8x72xf32>, vector<72x1152xf32>, vector<8x1152xf32> -> vector<8x1152xf32>
    %cst_22 = arith.constant dense<0.000000e+00> : vector<8xf32>
    %48 = vector.multi_reduction <add>, %47, %cst_22 [1] : vector<8x1152xf32> to vector<8xf32>
    %49 = vector.shape_cast %48 : vector<8xf32> to vector<8x1xf32>
    %cst_23 = arith.constant 8.68055562E-4 : f32
    %50 = vector.broadcast %cst_23 : f32 to vector<8x1xf32>
    %51 = arith.mulf %49, %50 : vector<8x1xf32>
    %52 = vector.broadcast %51 : vector<8x1xf32> to vector<8x1152xf32>
    %53 = arith.subf %47, %52 : vector<8x1152xf32>
    %54 = arith.mulf %53, %53 : vector<8x1152xf32>
    %cst_24 = arith.constant dense<0.000000e+00> : vector<8xf32>
    %55 = vector.multi_reduction <add>, %54, %cst_24 [1] : vector<8x1152xf32> to vector<8xf32>
    %56 = vector.shape_cast %55 : vector<8xf32> to vector<8x1xf32>
    %cst_25 = arith.constant 8.68055562E-4 : f32
    %57 = vector.broadcast %cst_25 : f32 to vector<8x1xf32>
    %58 = arith.mulf %56, %57 : vector<8x1xf32>
    %c0_26 = arith.constant 0 : index
    %c0_27 = arith.constant 0 : index
    %59 = vector.load %arg3[%c0_26, %c0_27] : memref<8x1xf32, #tpu.memory_space<vmem>>, vector<8x1xf32>
    %cst_28 = arith.constant 9.99999974E-6 : f32
    %60 = vector.broadcast %cst_28 : f32 to vector<8x1xf32>
    %61 = arith.addf %58, %60 : vector<8x1xf32>
    %62 = math.rsqrt %61 : vector<8x1xf32>
    %63 = arith.mulf %59, %62 : vector<8x1xf32>
    %64 = vector.broadcast %63 : vector<8x1xf32> to vector<8x1152xf32>
    %65 = arith.mulf %53, %64 : vector<8x1152xf32>
    %c0_29 = arith.constant 0 : index
    %c0_30 = arith.constant 0 : index
    %66 = vector.load %arg4[%c0_29, %c0_30] : memref<8x1xf32, #tpu.memory_space<vmem>>, vector<8x1xf32>
    %67 = vector.broadcast %66 : vector<8x1xf32> to vector<8x1152xf32>
    %68 = arith.addf %65, %67 : vector<8x1152xf32>
    %cst_31 = arith.constant 0.000000e+00 : f32
    %69 = vector.broadcast %cst_31 : f32 to vector<8x1152xf32>
    %70 = arith.maximumf %68, %69 : vector<8x1152xf32>
    %c25_i32_32 = arith.constant 25 : i32
    %71 = tpu.dynamic_rotate %70 by %c25_i32_32 dim 1 : vector<8x1152xf32>, i32 -> vector<8x1152xf32>
    %c0_33 = arith.constant 0 : index
    %c0_34 = arith.constant 0 : index
    %c0_35 = arith.constant 0 : index
    %72 = vector.load %arg1[%c0_33, %c0_34, %c0_35] : memref<9x1x1152xf32, #tpu.memory_space<vmem>>, vector<1x1x1152xf32>
    %73 = vector.shape_cast %72 : vector<1x1x1152xf32> to vector<1x1152xf32>
    %74 = vector.broadcast %73 : vector<1x1152xf32> to vector<8x1152xf32>
    %75 = arith.mulf %71, %74 : vector<8x1152xf32>
    %c24_i32_36 = arith.constant 24 : i32
    %76 = tpu.dynamic_rotate %70 by %c24_i32_36 dim 1 : vector<8x1152xf32>, i32 -> vector<8x1152xf32>
    %c1_37 = arith.constant 1 : index
    %c0_38 = arith.constant 0 : index
    %c0_39 = arith.constant 0 : index
    %77 = vector.load %arg1[%c1_37, %c0_38, %c0_39] : memref<9x1x1152xf32, #tpu.memory_space<vmem>>, vector<1x1x1152xf32>
    %78 = vector.shape_cast %77 : vector<1x1x1152xf32> to vector<1x1152xf32>
    %79 = vector.broadcast %78 : vector<1x1152xf32> to vector<8x1152xf32>
    %80 = arith.mulf %76, %79 : vector<8x1152xf32>
    %c23_i32_40 = arith.constant 23 : i32
    %81 = tpu.dynamic_rotate %70 by %c23_i32_40 dim 1 : vector<8x1152xf32>, i32 -> vector<8x1152xf32>
    %c2_41 = arith.constant 2 : index
    %c0_42 = arith.constant 0 : index
    %c0_43 = arith.constant 0 : index
    %82 = vector.load %arg1[%c2_41, %c0_42, %c0_43] : memref<9x1x1152xf32, #tpu.memory_space<vmem>>, vector<1x1x1152xf32>
    %83 = vector.shape_cast %82 : vector<1x1x1152xf32> to vector<1x1152xf32>
    %84 = vector.broadcast %83 : vector<1x1152xf32> to vector<8x1152xf32>
    %85 = arith.mulf %81, %84 : vector<8x1152xf32>
    %c1_i32_44 = arith.constant 1 : i32
    %86 = tpu.dynamic_rotate %70 by %c1_i32_44 dim 1 : vector<8x1152xf32>, i32 -> vector<8x1152xf32>
    %c3_45 = arith.constant 3 : index
    %c0_46 = arith.constant 0 : index
    %c0_47 = arith.constant 0 : index
    %87 = vector.load %arg1[%c3_45, %c0_46, %c0_47] : memref<9x1x1152xf32, #tpu.memory_space<vmem>>, vector<1x1x1152xf32>
    %88 = vector.shape_cast %87 : vector<1x1x1152xf32> to vector<1x1152xf32>
    %89 = vector.broadcast %88 : vector<1x1152xf32> to vector<8x1152xf32>
    %90 = arith.mulf %86, %89 : vector<8x1152xf32>
    %c4_48 = arith.constant 4 : index
    %c0_49 = arith.constant 0 : index
    %c0_50 = arith.constant 0 : index
    %91 = vector.load %arg1[%c4_48, %c0_49, %c0_50] : memref<9x1x1152xf32, #tpu.memory_space<vmem>>, vector<1x1x1152xf32>
    %92 = vector.shape_cast %91 : vector<1x1x1152xf32> to vector<1x1152xf32>
    %93 = vector.broadcast %92 : vector<1x1152xf32> to vector<8x1152xf32>
    %94 = arith.mulf %70, %93 : vector<8x1152xf32>
    %c1151_i32_51 = arith.constant 1151 : i32
    %95 = tpu.dynamic_rotate %70 by %c1151_i32_51 dim 1 : vector<8x1152xf32>, i32 -> vector<8x1152xf32>
    %c5_52 = arith.constant 5 : index
    %c0_53 = arith.constant 0 : index
    %c0_54 = arith.constant 0 : index
    %96 = vector.load %arg1[%c5_52, %c0_53, %c0_54] : memref<9x1x1152xf32, #tpu.memory_space<vmem>>, vector<1x1x1152xf32>
    %97 = vector.shape_cast %96 : vector<1x1x1152xf32> to vector<1x1152xf32>
    %98 = vector.broadcast %97 : vector<1x1152xf32> to vector<8x1152xf32>
    %99 = arith.mulf %95, %98 : vector<8x1152xf32>
    %c1129_i32_55 = arith.constant 1129 : i32
    %100 = tpu.dynamic_rotate %70 by %c1129_i32_55 dim 1 : vector<8x1152xf32>, i32 -> vector<8x1152xf32>
    %c6_56 = arith.constant 6 : index
    %c0_57 = arith.constant 0 : index
    %c0_58 = arith.constant 0 : index
    %101 = vector.load %arg1[%c6_56, %c0_57, %c0_58] : memref<9x1x1152xf32, #tpu.memory_space<vmem>>, vector<1x1x1152xf32>
    %102 = vector.shape_cast %101 : vector<1x1x1152xf32> to vector<1x1152xf32>
    %103 = vector.broadcast %102 : vector<1x1152xf32> to vector<8x1152xf32>
    %104 = arith.mulf %100, %103 : vector<8x1152xf32>
    %c1128_i32_59 = arith.constant 1128 : i32
    %105 = tpu.dynamic_rotate %70 by %c1128_i32_59 dim 1 : vector<8x1152xf32>, i32 -> vector<8x1152xf32>
    %c7_60 = arith.constant 7 : index
    %c0_61 = arith.constant 0 : index
    %c0_62 = arith.constant 0 : index
    %106 = vector.load %arg1[%c7_60, %c0_61, %c0_62] : memref<9x1x1152xf32, #tpu.memory_space<vmem>>, vector<1x1x1152xf32>
    %107 = vector.shape_cast %106 : vector<1x1x1152xf32> to vector<1x1152xf32>
    %108 = vector.broadcast %107 : vector<1x1152xf32> to vector<8x1152xf32>
    %109 = arith.mulf %105, %108 : vector<8x1152xf32>
    %c1127_i32_63 = arith.constant 1127 : i32
    %110 = tpu.dynamic_rotate %70 by %c1127_i32_63 dim 1 : vector<8x1152xf32>, i32 -> vector<8x1152xf32>
    %c8_64 = arith.constant 8 : index
    %c0_65 = arith.constant 0 : index
    %c0_66 = arith.constant 0 : index
    %111 = vector.load %arg1[%c8_64, %c0_65, %c0_66] : memref<9x1x1152xf32, #tpu.memory_space<vmem>>, vector<1x1x1152xf32>
    %112 = vector.shape_cast %111 : vector<1x1x1152xf32> to vector<1x1152xf32>
    %113 = vector.broadcast %112 : vector<1x1152xf32> to vector<8x1152xf32>
    %114 = arith.mulf %110, %113 : vector<8x1152xf32>
    %115 = tpu.concatenate %75, %80, %85, %90, %94, %99, %104, %109, %114 in 0 : vector<8x1152xf32>, vector<8x1152xf32>, vector<8x1152xf32>, vector<8x1152xf32>, vector<8x1152xf32>, vector<8x1152xf32>, vector<8x1152xf32>, vector<8x1152xf32>, vector<8x1152xf32> -> vector<72x1152xf32>
    %c0_67 = arith.constant 0 : index
    %c0_68 = arith.constant 0 : index
    %116 = vector.load %arg5[%c0_67, %c0_68] : memref<8x72xf32, #tpu.memory_space<vmem>>, vector<8x72xf32>
    %cst_69 = arith.constant dense<0.000000e+00> : vector<8x1152xf32>
    %117 = tpu.matmul %116, %115, %cst_69 {dimension_numbers = #tpu.dot_dimension_numbers<[1], [0], [0], [1], [0, 0, 1, 1], [], []>} : vector<8x72xf32>, vector<72x1152xf32>, vector<8x1152xf32> -> vector<8x1152xf32>
    %cst_70 = arith.constant dense<0.000000e+00> : vector<8xf32>
    %118 = vector.multi_reduction <add>, %117, %cst_70 [1] : vector<8x1152xf32> to vector<8xf32>
    %119 = vector.shape_cast %118 : vector<8xf32> to vector<8x1xf32>
    %cst_71 = arith.constant 8.68055562E-4 : f32
    %120 = vector.broadcast %cst_71 : f32 to vector<8x1xf32>
    %121 = arith.mulf %119, %120 : vector<8x1xf32>
    %122 = vector.broadcast %121 : vector<8x1xf32> to vector<8x1152xf32>
    %123 = arith.subf %117, %122 : vector<8x1152xf32>
    %124 = arith.mulf %123, %123 : vector<8x1152xf32>
    %cst_72 = arith.constant dense<0.000000e+00> : vector<8xf32>
    %125 = vector.multi_reduction <add>, %124, %cst_72 [1] : vector<8x1152xf32> to vector<8xf32>
    %126 = vector.shape_cast %125 : vector<8xf32> to vector<8x1xf32>
    %cst_73 = arith.constant 8.68055562E-4 : f32
    %127 = vector.broadcast %cst_73 : f32 to vector<8x1xf32>
    %128 = arith.mulf %126, %127 : vector<8x1xf32>
    %c0_74 = arith.constant 0 : index
    %c0_75 = arith.constant 0 : index
    %129 = vector.load %arg6[%c0_74, %c0_75] : memref<8x1xf32, #tpu.memory_space<vmem>>, vector<8x1xf32>
    %cst_76 = arith.constant 9.99999974E-6 : f32
    %130 = vector.broadcast %cst_76 : f32 to vector<8x1xf32>
    %131 = arith.addf %128, %130 : vector<8x1xf32>
    %132 = math.rsqrt %131 : vector<8x1xf32>
    %133 = arith.mulf %129, %132 : vector<8x1xf32>
    %134 = vector.broadcast %133 : vector<8x1xf32> to vector<8x1152xf32>
    %135 = arith.mulf %123, %134 : vector<8x1152xf32>
    %c0_77 = arith.constant 0 : index
    %c0_78 = arith.constant 0 : index
    %136 = vector.load %arg7[%c0_77, %c0_78] : memref<8x1xf32, #tpu.memory_space<vmem>>, vector<8x1xf32>
    %137 = vector.broadcast %136 : vector<8x1xf32> to vector<8x1152xf32>
    %138 = arith.addf %135, %137 : vector<8x1152xf32>
    %cst_79 = arith.constant 0.000000e+00 : f32
    %139 = vector.broadcast %cst_79 : f32 to vector<8x1152xf32>
    %140 = arith.maximumf %138, %139 : vector<8x1152xf32>
    %c0_80 = arith.constant 0 : index
    %c0_81 = arith.constant 0 : index
    %141 = vector.load %arg8[%c0_80, %c0_81] : memref<8x1152xf32, #tpu.memory_space<vmem>>, vector<8x1152xf32>
    tpu.vector_store %arg8[%c0_80, %c0_81], %140 {strides = array<i32>} : memref<8x1152xf32, #tpu.memory_space<vmem>>, vector<8x1152xf32>,
    return
  }
}

</mosaic_0001>

<llo_original>
// kernel: two_conv_block.1
$region0: #{two_conv_block.1}
  #allocation0 [shape = 'u32[]', space=smem, size = 0x4, offset = 0x4, fixed_abs, tag = 'smem constant byte address 0x4 - core index']
  #allocation1 [shape = 'u32[144,128]{1,0:T(1,128)}', space=vmem, size = 0x12000, scoped, tag = 'internal scratch']
  %s0 = inlined_call_operand.vmem [shape: f32[8,1152], index: 0, kind: input, shape index: {}]
  %s1 = inlined_call_operand.vmem [shape: f32[9,1,1152], index: 1, kind: input, shape index: {}]
  %s2 = inlined_call_operand.vmem [shape: f32[8,72], index: 2, kind: input, shape index: {}]
  %s3 = inlined_call_operand.vmem [shape: f32[8,1], index: 3, kind: input, shape index: {}]
  %s4 = inlined_call_operand.vmem [shape: f32[8,1], index: 4, kind: input, shape index: {}]
  %s5 = inlined_call_operand.vmem [shape: f32[8,72], index: 5, kind: input, shape index: {}]
  %s6 = inlined_call_operand.vmem [shape: f32[8,1], index: 6, kind: input, shape index: {}]
  %s7 = inlined_call_operand.vmem [shape: f32[8,1], index: 7, kind: input, shape index: {}]
  %s8 = inlined_call_operand.vmem [shape: f32[8,1152], index: 8, kind: output, shape index: {}]
  %s9 = sld [smem:[#allocation0]]
  $region42: #{two_conv_block.1} parent=0
    _
  %s11 = ssub.s32 1, %s9
  %s12 = scalar_select 0, %s11, %s9
  // Predicated region
  $region2: #{two_conv_block.1} parent=0 // pred_check
    _
  $region3: #{two_conv_block.1} parent=0 // pred_check_branch
    %14 = sbr.rel (0) target = $region5
  $region4: #{two_conv_block.1} parent=0 // pred_region
    _
  $region5: #{two_conv_block.1} parent=0 // pred_fallthru
    _
  // Predicated region
  $region6: #{two_conv_block.1} parent=0 // pred_check
    _
  $region7: #{two_conv_block.1} parent=0 // pred_check_branch
    %16 = sbr.rel (0) target = $region9
  $region8: #{two_conv_block.1} parent=0 // pred_region
    _
  $region9: #{two_conv_block.1} parent=0 // pred_fallthru
    _
  // Predicated region
  $region10: #{two_conv_block.1} parent=0 // pred_check
    _
  $region11: #{two_conv_block.1} parent=0 // pred_check_branch
    %18 = sbr.rel (0) target = $region13
  $region12: #{two_conv_block.1} parent=0 // pred_region
    _
  $region13: #{two_conv_block.1} parent=0 // pred_fallthru
    _
  // Predicated region
  $region14: #{two_conv_block.1} parent=0 // pred_check
    _
  $region15: #{two_conv_block.1} parent=0 // pred_check_branch
    %20 = sbr.rel (0) target = $region17
  $region16: #{two_conv_block.1} parent=0 // pred_region
    _
  $region17: #{two_conv_block.1} parent=0 // pred_fallthru
    _
  // Predicated region
  $region18: #{two_conv_block.1} parent=0 // pred_check
    _
  $region19: #{two_conv_block.1} parent=0 // pred_check_branch
    %22 = sbr.rel (0) target = $region21
  $region20: #{two_conv_block.1} parent=0 // pred_region
    _
  $region21: #{two_conv_block.1} parent=0 // pred_fallthru
    _
  // Predicated region
  $region22: #{two_conv_block.1} parent=0 // pred_check
    _
  $region23: #{two_conv_block.1} parent=0 // pred_check_branch
    %24 = sbr.rel (0) target = $region25
  $region24: #{two_conv_block.1} parent=0 // pred_region
    _
  $region25: #{two_conv_block.1} parent=0 // pred_fallthru
    _
  // Predicated region
  $region26: #{two_conv_block.1} parent=0 // pred_check
    _
  $region27: #{two_conv_block.1} parent=0 // pred_check_branch
    %26 = sbr.rel (0) target = $region29
  $region28: #{two_conv_block.1} parent=0 // pred_region
    _
  $region29: #{two_conv_block.1} parent=0 // pred_fallthru
    _
  // Predicated region
  $region30: #{two_conv_block.1} parent=0 // pred_check
    _
  $region31: #{two_conv_block.1} parent=0 // pred_check_branch
    %28 = sbr.rel (0) target = $region33
  $region32: #{two_conv_block.1} parent=0 // pred_region
    _
  $region33: #{two_conv_block.1} parent=0 // pred_fallthru
    _
  %v29 = vld [vmem:[%s0] sm:$0xff]
  %v30 = vld [vmem:[%s0 + $0x8] sm:$0xff]
  %v31 = vld [vmem:[%s0 + $0x10] sm:$0xff]
  %v32 = vld [vmem:[%s0 + $0x18] sm:$0xff]
  %v33 = vld [vmem:[%s0 + $0x20] sm:$0xff]
  %v34 = vld [vmem:[%s0 + $0x28] sm:$0xff]
  %v35 = vld [vmem:[%s0 + $0x30] sm:$0xff]
  %v36 = vld [vmem:[%s0 + $0x38] sm:$0xff]
  %v37 = vld [vmem:[%s0 + $0x40] sm:$0xff]
  %38 = vrot.lane.b32.xlu0 %v29, 25
  %v39 = vpop.permute.xlu0 %38
  %40 = vrot.lane.b32.xlu0 %v30, 25
  %v41 = vpop.permute.xlu0 %40
  %42 = vrot.lane.b32.xlu0 %v31, 25
  %v43 = vpop.permute.xlu0 %42
  %44 = vrot.lane.b32.xlu0 %v32, 25
  %v45 = vpop.permute.xlu0 %44
  %46 = vrot.lane.b32.xlu0 %v33, 25
  %v47 = vpop.permute.xlu0 %46
  %48 = vrot.lane.b32.xlu0 %v34, 25
  %v49 = vpop.permute.xlu0 %48
  %50 = vrot.lane.b32.xlu0 %v35, 25
  %v51 = vpop.permute.xlu0 %50
  %52 = vrot.lane.b32.xlu0 %v36, 25
  %v53 = vpop.permute.xlu0 %52
  %54 = vrot.lane.b32.xlu0 %v37, 25
  %v55 = vpop.permute.xlu0 %54
  %v56 = vlaneseq
  %v57 = vand.u32 %v56, 127
  %vm58 = vcmp.lt.s32.totalorder %v57, 25
  %v59 = vsel %vm58, %v53, %v55
  %v60 = vsel %vm58, %v51, %v53
  %v61 = vsel %vm58, %v49, %v51
  %v62 = vsel %vm58, %v47, %v49
  %v63 = vsel %vm58, %v45, %v47
  %v64 = vsel %vm58, %v43, %v45
  %v65 = vsel %vm58, %v41, %v43
  %v66 = vsel %vm58, %v39, %v41
  %v67 = vsel %vm58, %v55, %v39
  %v68 = vld [vmem:[%s1] sm:$0xff]
  %v69 = vld [vmem:[%s1 + $0x8] sm:$0x1]
  %v72 = vlaneseq
  %v73 = vshrl.u32 %v72, 7
  %v74 = vsub.s32 0, %v73
  %v75 = vrot.slane %v68, %v74
  %v76 = vlaneseq
  %v77 = vshrl.u32 %v76, 7
  %v78 = vsub.s32 1, %v77
  %v79 = vrot.slane %v68, %v78
  %v80 = vlaneseq
  %v81 = vshrl.u32 %v80, 7
  %v82 = vsub.s32 2, %v81
  %v83 = vrot.slane %v68, %v82
  %v84 = vlaneseq
  %v85 = vshrl.u32 %v84, 7
  %v86 = vsub.s32 3, %v85
  %v87 = vrot.slane %v68, %v86
  %v88 = vlaneseq
  %v89 = vshrl.u32 %v88, 7
  %v90 = vsub.s32 4, %v89
  %v91 = vrot.slane %v68, %v90
  %v92 = vlaneseq
  %v93 = vshrl.u32 %v92, 7
  %v94 = vsub.s32 5, %v93
  %v95 = vrot.slane %v68, %v94
  %v96 = vlaneseq
  %v97 = vshrl.u32 %v96, 7
  %v98 = vsub.s32 6, %v97
  %v99 = vrot.slane %v68, %v98
  %v100 = vlaneseq
  %v101 = vshrl.u32 %v100, 7
  %v102 = vsub.s32 7, %v101
  %v103 = vrot.slane %v68, %v102
  %v104 = vlaneseq
  %v105 = vshrl.u32 %v104, 7
  %v106 = vsub.s32 0, %v105
  %v107 = vrot.slane %v69, %v106
  %v117 = vmul.f32 %v67, %v75
  %v118 = vmul.f32 %v66, %v79
  %v119 = vmul.f32 %v65, %v83
  %v120 = vmul.f32 %v64, %v87
  %v121 = vmul.f32 %v63, %v91
  %v122 = vmul.f32 %v62, %v95
  %v123 = vmul.f32 %v61, %v99
  %v124 = vmul.f32 %v60, %v103
  %v125 = vmul.f32 %v59, %v107
  %126 = vrot.lane.b32.xlu0 %v29, 24
  %v127 = vpop.permute.xlu0 %126
  %128 = vrot.lane.b32.xlu0 %v30, 24
  %v129 = vpop.permute.xlu0 %128
  %130 = vrot.lane.b32.xlu0 %v31, 24
  %v131 = vpop.permute.xlu0 %130
  %132 = vrot.lane.b32.xlu0 %v32, 24
  %v133 = vpop.permute.xlu0 %132
  %134 = vrot.lane.b32.xlu0 %v33, 24
  %v135 = vpop.permute.xlu0 %134
  %136 = vrot.lane.b32.xlu0 %v34, 24
  %v137 = vpop.permute.xlu0 %136
  %138 = vrot.lane.b32.xlu0 %v35, 24
  %v139 = vpop.permute.xlu0 %138
  %140 = vrot.lane.b32.xlu0 %v36, 24
  %v141 = vpop.permute.xlu0 %140
  %142 = vrot.lane.b32.xlu0 %v37, 24
  %v143 = vpop.permute.xlu0 %142
  %vm144 = vcmp.lt.s32.totalorder %v57, 24
  %v145 = vsel %vm144, %v141, %v143
  %v146 = vsel %vm144, %v139, %v141
  %v147 = vsel %vm144, %v137, %v139
  %v148 = vsel %vm144, %v135, %v137
  %v149 = vsel %vm144, %v133, %v135
  %v150 = vsel %vm144, %v131, %v133
  %v151 = vsel %vm144, %v129, %v131
  %v152 = vsel %vm144, %v127, %v129
  %v153 = vsel %vm144, %v143, %v127
  %s154 = scalar_lea.vmem %s1, 9
  %v155 = vld [vmem:[%s154] sm:$0xff]
  %v156 = vld [vmem:[%s154 + $0x8] sm:$0x1]
  %v159 = vlaneseq
  %v160 = vshrl.u32 %v159, 7
  %v161 = vsub.s32 0, %v160
  %v162 = vrot.slane %v155, %v161
  %v163 = vlaneseq
  %v164 = vshrl.u32 %v163, 7
  %v165 = vsub.s32 1, %v164
  %v166 = vrot.slane %v155, %v165
  %v167 = vlaneseq
  %v168 = vshrl.u32 %v167, 7
  %v169 = vsub.s32 2, %v168
  %v170 = vrot.slane %v155, %v169
  %v171 = vlaneseq
  %v172 = vshrl.u32 %v171, 7
  %v173 = vsub.s32 3, %v172
  %v174 = vrot.slane %v155, %v173
  %v175 = vlaneseq
  %v176 = vshrl.u32 %v175, 7
  %v177 = vsub.s32 4, %v176
  %v178 = vrot.slane %v155, %v177
  %v179 = vlaneseq
  %v180 = vshrl.u32 %v179, 7
  %v181 = vsub.s32 5, %v180
  %v182 = vrot.slane %v155, %v181
  %v183 = vlaneseq
  %v184 = vshrl.u32 %v183, 7
  %v185 = vsub.s32 6, %v184
  %v186 = vrot.slane %v155, %v185
  %v187 = vlaneseq
  %v188 = vshrl.u32 %v187, 7
  %v189 = vsub.s32 7, %v188
  %v190 = vrot.slane %v155, %v189
  %v191 = vlaneseq
  %v192 = vshrl.u32 %v191, 7
  %v193 = vsub.s32 0, %v192
  %v194 = vrot.slane %v156, %v193
  %v204 = vmul.f32 %v153, %v162
  %v205 = vmul.f32 %v152, %v166
  %v206 = vmul.f32 %v151, %v170
  %v207 = vmul.f32 %v150, %v174
  %v208 = vmul.f32 %v149, %v178
  %v209 = vmul.f32 %v148, %v182
  %v210 = vmul.f32 %v147, %v186
  %v211 = vmul.f32 %v146, %v190
  %v212 = vmul.f32 %v145, %v194
  %213 = vrot.lane.b32.xlu0 %v29, 23
  %v214 = vpop.permute.xlu0 %213
  %215 = vrot.lane.b32.xlu0 %v30, 23
  %v216 = vpop.permute.xlu0 %215
  %217 = vrot.lane.b32.xlu0 %v31, 23
  %v218 = vpop.permute.xlu0 %217
  %219 = vrot.lane.b32.xlu0 %v32, 23
  %v220 = vpop.permute.xlu0 %219
  %221 = vrot.lane.b32.xlu0 %v33, 23
  %v222 = vpop.permute.xlu0 %221
  %223 = vrot.lane.b32.xlu0 %v34, 23
  %v224 = vpop.permute.xlu0 %223
  %225 = vrot.lane.b32.xlu0 %v35, 23
  %v226 = vpop.permute.xlu0 %225
  %227 = vrot.lane.b32.xlu0 %v36, 23
  %v228 = vpop.permute.xlu0 %227
  %229 = vrot.lane.b32.xlu0 %v37, 23
  %v230 = vpop.permute.xlu0 %229
  %vm231 = vcmp.lt.s32.totalorder %v57, 23
  %v232 = vsel %vm231, %v228, %v230
  %v233 = vsel %vm231, %v226, %v228
  %v234 = vsel %vm231, %v224, %v226
  %v235 = vsel %vm231, %v222, %v224
  %v236 = vsel %vm231, %v220, %v222
  %v237 = vsel %vm231, %v218, %v220
  %v238 = vsel %vm231, %v216, %v218
  %v239 = vsel %vm231, %v214, %v216
  %v240 = vsel %vm231, %v230, %v214
  %s241 = scalar_lea.vmem %s1, 18
  %v242 = vld [vmem:[%s241] sm:$0xff]
  %v243 = vld [vmem:[%s241 + $0x8] sm:$0x1]
  %v246 = vlaneseq
  %v247 = vshrl.u32 %v246, 7
  %v248 = vsub.s32 0, %v247
  %v249 = vrot.slane %v242, %v248
  %v250 = vlaneseq
  %v251 = vshrl.u32 %v250, 7
  %v252 = vsub.s32 1, %v251
  %v253 = vrot.slane %v242, %v252
  %v254 = vlaneseq
  %v255 = vshrl.u32 %v254, 7
  %v256 = vsub.s32 2, %v255
  %v257 = vrot.slane %v242, %v256
  %v258 = vlaneseq
  %v259 = vshrl.u32 %v258, 7
  %v260 = vsub.s32 3, %v259
  %v261 = vrot.slane %v242, %v260
  %v262 = vlaneseq
  %v263 = vshrl.u32 %v262, 7
  %v264 = vsub.s32 4, %v263
  %v265 = vrot.slane %v242, %v264
  %v266 = vlaneseq
  %v267 = vshrl.u32 %v266, 7
  %v268 = vsub.s32 5, %v267
  %v269 = vrot.slane %v242, %v268
  %v270 = vlaneseq
  %v271 = vshrl.u32 %v270, 7
  %v272 = vsub.s32 6, %v271
  %v273 = vrot.slane %v242, %v272
  %v274 = vlaneseq
  %v275 = vshrl.u32 %v274, 7
  %v276 = vsub.s32 7, %v275
  %v277 = vrot.slane %v242, %v276
  %v278 = vlaneseq
  %v279 = vshrl.u32 %v278, 7
  %v280 = vsub.s32 0, %v279
  %v281 = vrot.slane %v243, %v280
  %v291 = vmul.f32 %v240, %v249
  %v292 = vmul.f32 %v239, %v253
  %v293 = vmul.f32 %v238, %v257
  %v294 = vmul.f32 %v237, %v261
  %v295 = vmul.f32 %v236, %v265
  %v296 = vmul.f32 %v235, %v269
  %v297 = vmul.f32 %v234, %v273
  %v298 = vmul.f32 %v233, %v277
  %v299 = vmul.f32 %v232, %v281
  %300 = vrot.lane.b32.xlu0 %v29, 1
  %v301 = vpop.permute.xlu0 %300
  %302 = vrot.lane.b32.xlu0 %v30, 1
  %v303 = vpop.permute.xlu0 %302
  %304 = vrot.lane.b32.xlu0 %v31, 1
  %v305 = vpop.permute.xlu0 %304
  %306 = vrot.lane.b32.xlu0 %v32, 1
  %v307 = vpop.permute.xlu0 %306
  %308 = vrot.lane.b32.xlu0 %v33, 1
  %v309 = vpop.permute.xlu0 %308
  %310 = vrot.lane.b32.xlu0 %v34, 1
  %v311 = vpop.permute.xlu0 %310
  %312 = vrot.lane.b32.xlu0 %v35, 1
  %v313 = vpop.permute.xlu0 %312
  %314 = vrot.lane.b32.xlu0 %v36, 1
  %v315 = vpop.permute.xlu0 %314
  %316 = vrot.lane.b32.xlu0 %v37, 1
  %v317 = vpop.permute.xlu0 %316
  %vm318 = vcmp.lt.s32.totalorder %v57, 1
  %v319 = vsel %vm318, %v315, %v317
  %v320 = vsel %vm318, %v313, %v315
  %v321 = vsel %vm318, %v311, %v313
  %v322 = vsel %vm318, %v309, %v311
  %v323 = vsel %vm318, %v307, %v309
  %v324 = vsel %vm318, %v305, %v307
  %v325 = vsel %vm318, %v303, %v305
  %v326 = vsel %vm318, %v301, %v303
  %v327 = vsel %vm318, %v317, %v301
  %s328 = scalar_lea.vmem %s1, 27
  %v329 = vld [vmem:[%s328] sm:$0xff]
  %v330 = vld [vmem:[%s328 + $0x8] sm:$0x1]
  %v333 = vlaneseq
  %v334 = vshrl.u32 %v333, 7
  %v335 = vsub.s32 0, %v334
  %v336 = vrot.slane %v329, %v335
  %v337 = vlaneseq
  %v338 = vshrl.u32 %v337, 7
  %v339 = vsub.s32 1, %v338
  %v340 = vrot.slane %v329, %v339
  %v341 = vlaneseq
  %v342 = vshrl.u32 %v341, 7
  %v343 = vsub.s32 2, %v342
  %v344 = vrot.slane %v329, %v343
  %v345 = vlaneseq
  %v346 = vshrl.u32 %v345, 7
  %v347 = vsub.s32 3, %v346
  %v348 = vrot.slane %v329, %v347
  %v349 = vlaneseq
  %v350 = vshrl.u32 %v349, 7
  %v351 = vsub.s32 4, %v350
  %v352 = vrot.slane %v329, %v351
  %v353 = vlaneseq
  %v354 = vshrl.u32 %v353, 7
  %v355 = vsub.s32 5, %v354
  %v356 = vrot.slane %v329, %v355
  %v357 = vlaneseq
  %v358 = vshrl.u32 %v357, 7
  %v359 = vsub.s32 6, %v358
  %v360 = vrot.slane %v329, %v359
  %v361 = vlaneseq
  %v362 = vshrl.u32 %v361, 7
  %v363 = vsub.s32 7, %v362
  %v364 = vrot.slane %v329, %v363
  %v365 = vlaneseq
  %v366 = vshrl.u32 %v365, 7
  %v367 = vsub.s32 0, %v366
  %v368 = vrot.slane %v330, %v367
  %v378 = vmul.f32 %v327, %v336
  %v379 = vmul.f32 %v326, %v340
  %v380 = vmul.f32 %v325, %v344
  %v381 = vmul.f32 %v324, %v348
  %v382 = vmul.f32 %v323, %v352
  %v383 = vmul.f32 %v322, %v356
  %v384 = vmul.f32 %v321, %v360
  %v385 = vmul.f32 %v320, %v364
  %v386 = vmul.f32 %v319, %v368
  %s387 = scalar_lea.vmem %s1, 36
  %v388 = vld [vmem:[%s387] sm:$0xff]
  %v389 = vld [vmem:[%s387 + $0x8] sm:$0x1]
  %v392 = vlaneseq
  %v393 = vshrl.u32 %v392, 7
  %v394 = vsub.s32 0, %v393
  %v395 = vrot.slane %v388, %v394
  %v396 = vlaneseq
  %v397 = vshrl.u32 %v396, 7
  %v398 = vsub.s32 1, %v397
  %v399 = vrot.slane %v388, %v398
  %v400 = vlaneseq
  %v401 = vshrl.u32 %v400, 7
  %v402 = vsub.s32 2, %v401
  %v403 = vrot.slane %v388, %v402
  %v404 = vlaneseq
  %v405 = vshrl.u32 %v404, 7
  %v406 = vsub.s32 3, %v405
  %v407 = vrot.slane %v388, %v406
  %v408 = vlaneseq
  %v409 = vshrl.u32 %v408, 7
  %v410 = vsub.s32 4, %v409
  %v411 = vrot.slane %v388, %v410
  %v412 = vlaneseq
  %v413 = vshrl.u32 %v412, 7
  %v414 = vsub.s32 5, %v413
  %v415 = vrot.slane %v388, %v414
  %v416 = vlaneseq
  %v417 = vshrl.u32 %v416, 7
  %v418 = vsub.s32 6, %v417
  %v419 = vrot.slane %v388, %v418
  %v420 = vlaneseq
  %v421 = vshrl.u32 %v420, 7
  %v422 = vsub.s32 7, %v421
  %v423 = vrot.slane %v388, %v422
  %v424 = vlaneseq
  %v425 = vshrl.u32 %v424, 7
  %v426 = vsub.s32 0, %v425
  %v427 = vrot.slane %v389, %v426
  %v437 = vmul.f32 %v29, %v395
  %v438 = vmul.f32 %v30, %v399
  %v439 = vmul.f32 %v31, %v403
  %v440 = vmul.f32 %v32, %v407
  %v441 = vmul.f32 %v33, %v411
  %v442 = vmul.f32 %v34, %v415
  %v443 = vmul.f32 %v35, %v419
  %v444 = vmul.f32 %v36, %v423
  %v445 = vmul.f32 %v37, %v427
  %446 = vrot.lane.b32.xlu0 %v29, 127
  %v447 = vpop.permute.xlu0 %446
  %448 = vrot.lane.b32.xlu0 %v30, 127
  %v449 = vpop.permute.xlu0 %448
  %450 = vrot.lane.b32.xlu0 %v31, 127
  %v451 = vpop.permute.xlu0 %450
  %452 = vrot.lane.b32.xlu0 %v32, 127
  %v453 = vpop.permute.xlu0 %452
  %454 = vrot.lane.b32.xlu0 %v33, 127
  %v455 = vpop.permute.xlu0 %454
  %456 = vrot.lane.b32.xlu0 %v34, 127
  %v457 = vpop.permute.xlu0 %456
  %458 = vrot.lane.b32.xlu0 %v35, 127
  %v459 = vpop.permute.xlu0 %458
  %460 = vrot.lane.b32.xlu0 %v36, 127
  %v461 = vpop.permute.xlu0 %460
  %462 = vrot.lane.b32.xlu0 %v37, 127
  %v463 = vpop.permute.xlu0 %462
  %vm464 = vcmp.lt.s32.totalorder %v57, 127
  %v465 = vsel %vm464, %v461, %v463
  %v466 = vsel %vm464, %v459, %v461
  %v467 = vsel %vm464, %v457, %v459
  %v468 = vsel %vm464, %v455, %v457
  %v469 = vsel %vm464, %v453, %v455
  %v470 = vsel %vm464, %v451, %v453
  %v471 = vsel %vm464, %v449, %v451
  %v472 = vsel %vm464, %v447, %v449
  %v473 = vsel %vm464, %v463, %v447
  %s474 = scalar_lea.vmem %s1, 45
  %v475 = vld [vmem:[%s474] sm:$0xff]
  %v476 = vld [vmem:[%s474 + $0x8] sm:$0x1]
  %v479 = vlaneseq
  %v480 = vshrl.u32 %v479, 7
  %v481 = vsub.s32 0, %v480
  %v482 = vrot.slane %v475, %v481
  %v483 = vlaneseq
  %v484 = vshrl.u32 %v483, 7
  %v485 = vsub.s32 1, %v484
  %v486 = vrot.slane %v475, %v485
  %v487 = vlaneseq
  %v488 = vshrl.u32 %v487, 7
  %v489 = vsub.s32 2, %v488
  %v490 = vrot.slane %v475, %v489
  %v491 = vlaneseq
  %v492 = vshrl.u32 %v491, 7
  %v493 = vsub.s32 3, %v492
  %v494 = vrot.slane %v475, %v493
  %v495 = vlaneseq
  %v496 = vshrl.u32 %v495, 7
  %v497 = vsub.s32 4, %v496
  %v498 = vrot.slane %v475, %v497
  %v499 = vlaneseq
  %v500 = vshrl.u32 %v499, 7
  %v501 = vsub.s32 5, %v500
  %v502 = vrot.slane %v475, %v501
  %v503 = vlaneseq
  %v504 = vshrl.u32 %v503, 7
  %v505 = vsub.s32 6, %v504
  %v506 = vrot.slane %v475, %v505
  %v507 = vlaneseq
  %v508 = vshrl.u32 %v507, 7
  %v509 = vsub.s32 7, %v508
  %v510 = vrot.slane %v475, %v509
  %v511 = vlaneseq
  %v512 = vshrl.u32 %v511, 7
  %v513 = vsub.s32 0, %v512
  %v514 = vrot.slane %v476, %v513
  %v524 = vmul.f32 %v472, %v482
  %v525 = vmul.f32 %v471, %v486
  %v526 = vmul.f32 %v470, %v490
  %v527 = vmul.f32 %v469, %v494
  %v528 = vmul.f32 %v468, %v498
  %v529 = vmul.f32 %v467, %v502
  %v530 = vmul.f32 %v466, %v506
  %v531 = vmul.f32 %v465, %v510
  %v532 = vmul.f32 %v473, %v514
  %533 = vrot.lane.b32.xlu0 %v29, 105
  %v534 = vpop.permute.xlu0 %533
  %535 = vrot.lane.b32.xlu0 %v30, 105
  %v536 = vpop.permute.xlu0 %535
  %537 = vrot.lane.b32.xlu0 %v31, 105
  %v538 = vpop.permute.xlu0 %537
  %539 = vrot.lane.b32.xlu0 %v32, 105
  %v540 = vpop.permute.xlu0 %539
  %541 = vrot.lane.b32.xlu0 %v33, 105
  %v542 = vpop.permute.xlu0 %541
  %543 = vrot.lane.b32.xlu0 %v34, 105
  %v544 = vpop.permute.xlu0 %543
  %545 = vrot.lane.b32.xlu0 %v35, 105
  %v546 = vpop.permute.xlu0 %545
  %547 = vrot.lane.b32.xlu0 %v36, 105
  %v548 = vpop.permute.xlu0 %547
  %549 = vrot.lane.b32.xlu0 %v37, 105
  %v550 = vpop.permute.xlu0 %549
  %vm551 = vcmp.lt.s32.totalorder %v57, 105
  %v552 = vsel %vm551, %v548, %v550
  %v553 = vsel %vm551, %v546, %v548
  %v554 = vsel %vm551, %v544, %v546
  %v555 = vsel %vm551, %v542, %v544
  %v556 = vsel %vm551, %v540, %v542
  %v557 = vsel %vm551, %v538, %v540
  %v558 = vsel %vm551, %v536, %v538
  %v559 = vsel %vm551, %v534, %v536
  %v560 = vsel %vm551, %v550, %v534
  %s561 = scalar_lea.vmem %s1, 54
  %v562 = vld [vmem:[%s561] sm:$0xff]
  %v563 = vld [vmem:[%s561 + $0x8] sm:$0x1]
  %v566 = vlaneseq
  %v567 = vshrl.u32 %v566, 7
  %v568 = vsub.s32 0, %v567
  %v569 = vrot.slane %v562, %v568
  %v570 = vlaneseq
  %v571 = vshrl.u32 %v570, 7
  %v572 = vsub.s32 1, %v571
  %v573 = vrot.slane %v562, %v572
  %v574 = vlaneseq
  %v575 = vshrl.u32 %v574, 7
  %v576 = vsub.s32 2, %v575
  %v577 = vrot.slane %v562, %v576
  %v578 = vlaneseq
  %v579 = vshrl.u32 %v578, 7
  %v580 = vsub.s32 3, %v579
  %v581 = vrot.slane %v562, %v580
  %v582 = vlaneseq
  %v583 = vshrl.u32 %v582, 7
  %v584 = vsub.s32 4, %v583
  %v585 = vrot.slane %v562, %v584
  %v586 = vlaneseq
  %v587 = vshrl.u32 %v586, 7
  %v588 = vsub.s32 5, %v587
  %v589 = vrot.slane %v562, %v588
  %v590 = vlaneseq
  %v591 = vshrl.u32 %v590, 7
  %v592 = vsub.s32 6, %v591
  %v593 = vrot.slane %v562, %v592
  %v594 = vlaneseq
  %v595 = vshrl.u32 %v594, 7
  %v596 = vsub.s32 7, %v595
  %v597 = vrot.slane %v562, %v596
  %v598 = vlaneseq
  %v599 = vshrl.u32 %v598, 7
  %v600 = vsub.s32 0, %v599
  %v601 = vrot.slane %v563, %v600
  %v611 = vmul.f32 %v559, %v569
  %v612 = vmul.f32 %v558, %v573
  %v613 = vmul.f32 %v557, %v577
  %v614 = vmul.f32 %v556, %v581
  %v615 = vmul.f32 %v555, %v585
  %v616 = vmul.f32 %v554, %v589
  %v617 = vmul.f32 %v553, %v593
  %v618 = vmul.f32 %v552, %v597
  %v619 = vmul.f32 %v560, %v601
  %620 = vrot.lane.b32.xlu0 %v29, 104
  %v621 = vpop.permute.xlu0 %620
  %622 = vrot.lane.b32.xlu0 %v30, 104
  %v623 = vpop.permute.xlu0 %622
  %624 = vrot.lane.b32.xlu0 %v31, 104
  %v625 = vpop.permute.xlu0 %624
  %626 = vrot.lane.b32.xlu0 %v32, 104
  %v627 = vpop.permute.xlu0 %626
  %628 = vrot.lane.b32.xlu0 %v33, 104
  %v629 = vpop.permute.xlu0 %628
  %630 = vrot.lane.b32.xlu0 %v34, 104
  %v631 = vpop.permute.xlu0 %630
  %632 = vrot.lane.b32.xlu0 %v35, 104
  %v633 = vpop.permute.xlu0 %632
  %634 = vrot.lane.b32.xlu0 %v36, 104
  %v635 = vpop.permute.xlu0 %634
  %636 = vrot.lane.b32.xlu0 %v37, 104
  %v637 = vpop.permute.xlu0 %636
  %vm638 = vcmp.lt.s32.totalorder %v57, 104
  %v639 = vsel %vm638, %v635, %v637
  %v640 = vsel %vm638, %v633, %v635
  %v641 = vsel %vm638, %v631, %v633
  %v642 = vsel %vm638, %v629, %v631
  %v643 = vsel %vm638, %v627, %v629
  %v644 = vsel %vm638, %v625, %v627
  %v645 = vsel %vm638, %v623, %v625
  %v646 = vsel %vm638, %v621, %v623
  %v647 = vsel %vm638, %v637, %v621
  %s648 = scalar_lea.vmem %s1, 63
  %v649 = vld [vmem:[%s648] sm:$0xff]
  %v650 = vld [vmem:[%s648 + $0x8] sm:$0x1]
  %v653 = vlaneseq
  %v654 = vshrl.u32 %v653, 7
  %v655 = vsub.s32 0, %v654
  %v656 = vrot.slane %v649, %v655
  %v657 = vlaneseq
  %v658 = vshrl.u32 %v657, 7
  %v659 = vsub.s32 1, %v658
  %v660 = vrot.slane %v649, %v659
  %v661 = vlaneseq
  %v662 = vshrl.u32 %v661, 7
  %v663 = vsub.s32 2, %v662
  %v664 = vrot.slane %v649, %v663
  %v665 = vlaneseq
  %v666 = vshrl.u32 %v665, 7
  %v667 = vsub.s32 3, %v666
  %v668 = vrot.slane %v649, %v667
  %v669 = vlaneseq
  %v670 = vshrl.u32 %v669, 7
  %v671 = vsub.s32 4, %v670
  %v672 = vrot.slane %v649, %v671
  %v673 = vlaneseq
  %v674 = vshrl.u32 %v673, 7
  %v675 = vsub.s32 5, %v674
  %v676 = vrot.slane %v649, %v675
  %v677 = vlaneseq
  %v678 = vshrl.u32 %v677, 7
  %v679 = vsub.s32 6, %v678
  %v680 = vrot.slane %v649, %v679
  %v681 = vlaneseq
  %v682 = vshrl.u32 %v681, 7
  %v683 = vsub.s32 7, %v682
  %v684 = vrot.slane %v649, %v683
  %v685 = vlaneseq
  %v686 = vshrl.u32 %v685, 7
  %v687 = vsub.s32 0, %v686
  %v688 = vrot.slane %v650, %v687
  %v698 = vmul.f32 %v646, %v656
  %v699 = vmul.f32 %v645, %v660
  %v700 = vmul.f32 %v644, %v664
  %v701 = vmul.f32 %v643, %v668
  %v702 = vmul.f32 %v642, %v672
  %v703 = vmul.f32 %v641, %v676
  %v704 = vmul.f32 %v640, %v680
  %v705 = vmul.f32 %v639, %v684
  %v706 = vmul.f32 %v647, %v688
  %707 = vrot.lane.b32.xlu0 %v29, 103
  %v708 = vpop.permute.xlu0 %707
  %709 = vrot.lane.b32.xlu0 %v30, 103
  %v710 = vpop.permute.xlu0 %709
  %711 = vrot.lane.b32.xlu0 %v31, 103
  %v712 = vpop.permute.xlu0 %711
  %713 = vrot.lane.b32.xlu0 %v32, 103
  %v714 = vpop.permute.xlu0 %713
  %715 = vrot.lane.b32.xlu0 %v33, 103
  %v716 = vpop.permute.xlu0 %715
  %717 = vrot.lane.b32.xlu0 %v34, 103
  %v718 = vpop.permute.xlu0 %717
  %719 = vrot.lane.b32.xlu0 %v35, 103
  %v720 = vpop.permute.xlu0 %719
  %721 = vrot.lane.b32.xlu0 %v36, 103
  %v722 = vpop.permute.xlu0 %721
  %723 = vrot.lane.b32.xlu0 %v37, 103
  %v724 = vpop.permute.xlu0 %723
  %vm725 = vcmp.lt.s32.totalorder %v57, 103
  %v726 = vsel %vm725, %v722, %v724
  %v727 = vsel %vm725, %v720, %v722
  %v728 = vsel %vm725, %v718, %v720
  %v729 = vsel %vm725, %v716, %v718
  %v730 = vsel %vm725, %v714, %v716
  %v731 = vsel %vm725, %v712, %v714
  %v732 = vsel %vm725, %v710, %v712
  %v733 = vsel %vm725, %v708, %v710
  %v734 = vsel %vm725, %v724, %v708
  %s735 = scalar_lea.vmem %s1, 72
  %v736 = vld [vmem:[%s735] sm:$0xff]
  %v737 = vld [vmem:[%s735 + $0x8] sm:$0x1]
  %v740 = vlaneseq
  %v741 = vshrl.u32 %v740, 7
  %v742 = vsub.s32 0, %v741
  %v743 = vrot.slane %v736, %v742
  %v744 = vlaneseq
  %v745 = vshrl.u32 %v744, 7
  %v746 = vsub.s32 1, %v745
  %v747 = vrot.slane %v736, %v746
  %v748 = vlaneseq
  %v749 = vshrl.u32 %v748, 7
  %v750 = vsub.s32 2, %v749
  %v751 = vrot.slane %v736, %v750
  %v752 = vlaneseq
  %v753 = vshrl.u32 %v752, 7
  %v754 = vsub.s32 3, %v753
  %v755 = vrot.slane %v736, %v754
  %v756 = vlaneseq
  %v757 = vshrl.u32 %v756, 7
  %v758 = vsub.s32 4, %v757
  %v759 = vrot.slane %v736, %v758
  %v760 = vlaneseq
  %v761 = vshrl.u32 %v760, 7
  %v762 = vsub.s32 5, %v761
  %v763 = vrot.slane %v736, %v762
  %v764 = vlaneseq
  %v765 = vshrl.u32 %v764, 7
  %v766 = vsub.s32 6, %v765
  %v767 = vrot.slane %v736, %v766
  %v768 = vlaneseq
  %v769 = vshrl.u32 %v768, 7
  %v770 = vsub.s32 7, %v769
  %v771 = vrot.slane %v736, %v770
  %v772 = vlaneseq
  %v773 = vshrl.u32 %v772, 7
  %v774 = vsub.s32 0, %v773
  %v775 = vrot.slane %v737, %v774
  %v785 = vmul.f32 %v733, %v743
  %v786 = vmul.f32 %v732, %v747
  %v787 = vmul.f32 %v731, %v751
  %v788 = vmul.f32 %v730, %v755
  %v789 = vmul.f32 %v729, %v759
  %v790 = vmul.f32 %v728, %v763
  %v791 = vmul.f32 %v727, %v767
  %v792 = vmul.f32 %v726, %v771
  %v793 = vmul.f32 %v734, %v775
  %v794 = vld [vmem:[%s2] sm:$0xff]
  %vm795 = vcmask 588800
  %v797 = vsel %vm795, %v794, 0
  %799 = vmatprep.subr.mxu0 %v118
  %800 = vmatpush1.msra.mxu0 %v117
  %801 = vmatprep.subr.mxu0 %v205
  %802 = vmatpush1.msra.mxu0 %v204
  %803 = vmatprep.subr.mxu0 %v292
  %804 = vmatpush1.msra.mxu0 %v291
  %805 = vmatprep.subr.mxu0 %v379
  %806 = vmatpush1.msra.mxu0 %v378
  %807 = vmatprep.subr.mxu0 %v438
  %808 = vmatpush1.msra.mxu0 %v437
  %809 = vmatprep.subr.mxu0 %v525
  %810 = vmatpush1.msra.mxu0 %v524
  %811 = vmatprep.subr.mxu0 %v612
  %812 = vmatpush1.msra.mxu0 %v611
  %813 = vmatprep.subr.mxu0 %v699
  %814 = vmatpush1.msra.mxu0 %v698
  %815 = vmatprep.subr.mxu0 %v786
  %816 = vmatpush1.msra.mxu0 %v785
  %817 = vmatprep.subr.mxu0 0.0
  %818 = vmatpush1.msra.mxu0 0.0
  %819 = vmatprep.subr.mxu0 0.0
  %820 = vmatpush1.msra.mxu0 0.0
  %821 = vmatprep.subr.mxu0 0.0
  %822 = vmatpush1.msra.mxu0 0.0
  %823 = vmatprep.subr.mxu0 0.0
  %824 = vmatpush1.msra.mxu0 0.0
  %825 = vmatprep.subr.mxu0 0.0
  %826 = vmatpush1.msra.mxu0 0.0
  %827 = vmatprep.subr.mxu0 0.0
  %828 = vmatpush1.msra.mxu0 0.0
  %829 = vmatprep.subr.mxu0 0.0
  %830 = vmatpush1.msra.mxu0 0.0
  %831 = vmatprep.subr.mxu0 0.0
  %832 = vmatpush1.msra.mxu0 0.0
  %833 = vmatprep.subr.mxu0 0.0
  %834 = vmatpush1.msra.mxu0 0.0
  %835 = vmatprep.subr.mxu0 0.0
  %836 = vmatpush1.msra.mxu0 0.0
  %837 = vmatprep.subr.mxu0 0.0
  %838 = vmatpush1.msra.mxu0 0.0
  %839 = vmatprep.subr.mxu0 0.0
  %840 = vmatpush1.msra.mxu0 0.0
  %841 = vmatprep.subr.mxu0 0.0
  %842 = vmatpush1.msra.mxu0 0.0
  %843 = vmatprep.subr.mxu0 0.0
  %844 = vmatpush1.msra.mxu0 0.0
  %845 = vmatprep.subr.mxu0 0.0
  %846 = vmatpush1.msra.mxu0 0.0
  %847 = vmatprep.subr.mxu0 0.0
  %848 = vmatpush1.msra.mxu0 0.0
  %849 = vmatprep.subr.mxu0 0.0
  %850 = vmatpush1.msra.mxu0 0.0
  %851 = vmatprep.subr.mxu0 0.0
  %852 = vmatpush1.msra.mxu0 0.0
  %853 = vmatprep.subr.mxu0 0.0
  %854 = vmatpush1.msra.mxu0 0.0
  %855 = vmatprep.subr.mxu0 0.0
  %856 = vmatpush1.msra.mxu0 0.0
  %857 = vmatprep.subr.mxu0 0.0
  %858 = vmatpush1.msra.mxu0 0.0
  %859 = vmatprep.subr.mxu0 0.0
  %860 = vmatpush1.msra.mxu0 0.0
  %861 = vmatprep.subr.mxu0 0.0
  %862 = vmatpush1.msra.mxu0 0.0
  %863 = vmatprep.mubr.f32.mxu0 0.0
  %864 = vmatmul.mubr.f32.gmra.mrb[0].mxu0 %v797
  %v865 = vpop.f32.mrb[0].mxu0
  %v866 = vadd.f32 0.0, %v865
  %v867 = vpop.f32.mrb[0].mxu0
  %v868 = vadd.f32 0.0, %v867
  %869 = vdwg.mxu0
  %870 = vmatprep.subr.mxu0 %v120
  %871 = vmatpush1.msra.mxu0 %v119
  %872 = vmatprep.subr.mxu0 %v207
  %873 = vmatpush1.msra.mxu0 %v206
  %874 = vmatprep.subr.mxu0 %v294
  %875 = vmatpush1.msra.mxu0 %v293
  %876 = vmatprep.subr.mxu0 %v381
  %877 = vmatpush1.msra.mxu0 %v380
  %878 = vmatprep.subr.mxu0 %v440
  %879 = vmatpush1.msra.mxu0 %v439
  %880 = vmatprep.subr.mxu0 %v527
  %881 = vmatpush1.msra.mxu0 %v526
  %882 = vmatprep.subr.mxu0 %v614
  %883 = vmatpush1.msra.mxu0 %v613
  %884 = vmatprep.subr.mxu0 %v701
  %885 = vmatpush1.msra.mxu0 %v700
  %886 = vmatprep.subr.mxu0 %v788
  %887 = vmatpush1.msra.mxu0 %v787
  %888 = vmatprep.subr.mxu0 0.0
  %889 = vmatpush1.msra.mxu0 0.0
  %890 = vmatprep.subr.mxu0 0.0
  %891 = vmatpush1.msra.mxu0 0.0
  %892 = vmatprep.subr.mxu0 0.0
  %893 = vmatpush1.msra.mxu0 0.0
  %894 = vmatprep.subr.mxu0 0.0
  %895 = vmatpush1.msra.mxu0 0.0
  %896 = vmatprep.subr.mxu0 0.0
  %897 = vmatpush1.msra.mxu0 0.0
  %898 = vmatprep.subr.mxu0 0.0
  %899 = vmatpush1.msra.mxu0 0.0
  %900 = vmatprep.subr.mxu0 0.0
  %901 = vmatpush1.msra.mxu0 0.0
  %902 = vmatprep.subr.mxu0 0.0
  %903 = vmatpush1.msra.mxu0 0.0
  %904 = vmatprep.subr.mxu0 0.0
  %905 = vmatpush1.msra.mxu0 0.0
  %906 = vmatprep.subr.mxu0 0.0
  %907 = vmatpush1.msra.mxu0 0.0
  %908 = vmatprep.subr.mxu0 0.0
  %909 = vmatpush1.msra.mxu0 0.0
  %910 = vmatprep.subr.mxu0 0.0
  %911 = vmatpush1.msra.mxu0 0.0
  %912 = vmatprep.subr.mxu0 0.0
  %913 = vmatpush1.msra.mxu0 0.0
  %914 = vmatprep.subr.mxu0 0.0
  %915 = vmatpush1.msra.mxu0 0.0
  %916 = vmatprep.subr.mxu0 0.0
  %917 = vmatpush1.msra.mxu0 0.0
  %918 = vmatprep.subr.mxu0 0.0
  %919 = vmatpush1.msra.mxu0 0.0
  %920 = vmatprep.subr.mxu0 0.0
  %921 = vmatpush1.msra.mxu0 0.0
  %922 = vmatprep.subr.mxu0 0.0
  %923 = vmatpush1.msra.mxu0 0.0
  %924 = vmatprep.subr.mxu0 0.0
  %925 = vmatpush1.msra.mxu0 0.0
  %926 = vmatprep.subr.mxu0 0.0
  %927 = vmatpush1.msra.mxu0 0.0
  %928 = vmatprep.subr.mxu0 0.0
  %929 = vmatpush1.msra.mxu0 0.0
  %930 = vmatprep.subr.mxu0 0.0
  %931 = vmatpush1.msra.mxu0 0.0
  %932 = vmatprep.subr.mxu0 0.0
  %933 = vmatpush1.msra.mxu0 0.0
  %934 = vmatprep.mubr.f32.mxu0 0.0
  %935 = vmatmul.mubr.f32.gmra.mrb[0].mxu0 %v797
  %v936 = vpop.f32.mrb[0].mxu0
  %v937 = vadd.f32 0.0, %v936
  %v938 = vpop.f32.mrb[0].mxu0
  %v939 = vadd.f32 0.0, %v938
  %940 = vdwg.mxu0
  %941 = vmatprep.subr.mxu0 %v122
  %942 = vmatpush1.msra.mxu0 %v121
  %943 = vmatprep.subr.mxu0 %v209
  %944 = vmatpush1.msra.mxu0 %v208
  %945 = vmatprep.subr.mxu0 %v296
  %946 = vmatpush1.msra.mxu0 %v295
  %947 = vmatprep.subr.mxu0 %v383
  %948 = vmatpush1.msra.mxu0 %v382
  %949 = vmatprep.subr.mxu0 %v442
  %950 = vmatpush1.msra.mxu0 %v441
  %951 = vmatprep.subr.mxu0 %v529
  %952 = vmatpush1.msra.mxu0 %v528
  %953 = vmatprep.subr.mxu0 %v616
  %954 = vmatpush1.msra.mxu0 %v615
  %955 = vmatprep.subr.mxu0 %v703
  %956 = vmatpush1.msra.mxu0 %v702
  %957 = vmatprep.subr.mxu0 %v790
  %958 = vmatpush1.msra.mxu0 %v789
  %959 = vmatprep.subr.mxu0 0.0
  %960 = vmatpush1.msra.mxu0 0.0
  %961 = vmatprep.subr.mxu0 0.0
  %962 = vmatpush1.msra.mxu0 0.0
  %963 = vmatprep.subr.mxu0 0.0
  %964 = vmatpush1.msra.mxu0 0.0
  %965 = vmatprep.subr.mxu0 0.0
  %966 = vmatpush1.msra.mxu0 0.0
  %967 = vmatprep.subr.mxu0 0.0
  %968 = vmatpush1.msra.mxu0 0.0
  %969 = vmatprep.subr.mxu0 0.0
  %970 = vmatpush1.msra.mxu0 0.0
  %971 = vmatprep.subr.mxu0 0.0
  %972 = vmatpush1.msra.mxu0 0.0
  %973 = vmatprep.subr.mxu0 0.0
  %974 = vmatpush1.msra.mxu0 0.0
  %975 = vmatprep.subr.mxu0 0.0
  %976 = vmatpush1.msra.mxu0 0.0
  %977 = vmatprep.subr.mxu0 0.0
  %978 = vmatpush1.msra.mxu0 0.0
  %979 = vmatprep.subr.mxu0 0.0
  %980 = vmatpush1.msra.mxu0 0.0
  %981 = vmatprep.subr.mxu0 0.0
  %982 = vmatpush1.msra.mxu0 0.0
  %983 = vmatprep.subr.mxu0 0.0
  %984 = vmatpush1.msra.mxu0 0.0
  %985 = vmatprep.subr.mxu0 0.0
  %986 = vmatpush1.msra.mxu0 0.0
  %987 = vmatprep.subr.mxu0 0.0
  %988 = vmatpush1.msra.mxu0 0.0
  %989 = vmatprep.subr.mxu0 0.0
  %990 = vmatpush1.msra.mxu0 0.0
  %991 = vmatprep.subr.mxu0 0.0
  %992 = vmatpush1.msra.mxu0 0.0
  %993 = vmatprep.subr.mxu0 0.0
  %994 = vmatpush1.msra.mxu0 0.0
  %995 = vmatprep.subr.mxu0 0.0
  %996 = vmatpush1.msra.mxu0 0.0
  %997 = vmatprep.subr.mxu0 0.0
  %998 = vmatpush1.msra.mxu0 0.0
  %999 = vmatprep.subr.mxu0 0.0
  %1000 = vmatpush1.msra.mxu0 0.0
  %1001 = vmatprep.subr.mxu0 0.0
  %1002 = vmatpush1.msra.mxu0 0.0
  %1003 = vmatprep.subr.mxu0 0.0
  %1004 = vmatpush1.msra.mxu0 0.0
  %1005 = vmatprep.mubr.f32.mxu0 0.0
  %1006 = vmatmul.mubr.f32.gmra.mrb[0].mxu0 %v797
  %v1007 = vpop.f32.mrb[0].mxu0
  %v1008 = vadd.f32 0.0, %v1007
  %v1009 = vpop.f32.mrb[0].mxu0
  %v1010 = vadd.f32 0.0, %v1009
  %1011 = vdwg.mxu0
  %1012 = vmatprep.subr.mxu0 %v124
  %1013 = vmatpush1.msra.mxu0 %v123
  %1014 = vmatprep.subr.mxu0 %v211
  %1015 = vmatpush1.msra.mxu0 %v210
  %1016 = vmatprep.subr.mxu0 %v298
  %1017 = vmatpush1.msra.mxu0 %v297
  %1018 = vmatprep.subr.mxu0 %v385
  %1019 = vmatpush1.msra.mxu0 %v384
  %1020 = vmatprep.subr.mxu0 %v444
  %1021 = vmatpush1.msra.mxu0 %v443
  %1022 = vmatprep.subr.mxu0 %v531
  %1023 = vmatpush1.msra.mxu0 %v530
  %1024 = vmatprep.subr.mxu0 %v618
  %1025 = vmatpush1.msra.mxu0 %v617
  %1026 = vmatprep.subr.mxu0 %v705
  %1027 = vmatpush1.msra.mxu0 %v704
  %1028 = vmatprep.subr.mxu0 %v792
  %1029 = vmatpush1.msra.mxu0 %v791
  %1030 = vmatprep.subr.mxu0 0.0
  %1031 = vmatpush1.msra.mxu0 0.0
  %1032 = vmatprep.subr.mxu0 0.0
  %1033 = vmatpush1.msra.mxu0 0.0
  %1034 = vmatprep.subr.mxu0 0.0
  %1035 = vmatpush1.msra.mxu0 0.0
  %1036 = vmatprep.subr.mxu0 0.0
  %1037 = vmatpush1.msra.mxu0 0.0
  %1038 = vmatprep.subr.mxu0 0.0
  %1039 = vmatpush1.msra.mxu0 0.0
  %1040 = vmatprep.subr.mxu0 0.0
  %1041 = vmatpush1.msra.mxu0 0.0
  %1042 = vmatprep.subr.mxu0 0.0
  %1043 = vmatpush1.msra.mxu0 0.0
  %1044 = vmatprep.subr.mxu0 0.0
  %1045 = vmatpush1.msra.mxu0 0.0
  %1046 = vmatprep.subr.mxu0 0.0
  %1047 = vmatpush1.msra.mxu0 0.0
  %1048 = vmatprep.subr.mxu0 0.0
  %1049 = vmatpush1.msra.mxu0 0.0
  %1050 = vmatprep.subr.mxu0 0.0
  %1051 = vmatpush1.msra.mxu0 0.0
  %1052 = vmatprep.subr.mxu0 0.0
  %1053 = vmatpush1.msra.mxu0 0.0
  %1054 = vmatprep.subr.mxu0 0.0
  %1055 = vmatpush1.msra.mxu0 0.0
  %1056 = vmatprep.subr.mxu0 0.0
  %1057 = vmatpush1.msra.mxu0 0.0
  %1058 = vmatprep.subr.mxu0 0.0
  %1059 = vmatpush1.msra.mxu0 0.0
  %1060 = vmatprep.subr.mxu0 0.0
  %1061 = vmatpush1.msra.mxu0 0.0
  %1062 = vmatprep.subr.mxu0 0.0
  %1063 = vmatpush1.msra.mxu0 0.0
  %1064 = vmatprep.subr.mxu0 0.0
  %1065 = vmatpush1.msra.mxu0 0.0
  %1066 = vmatprep.subr.mxu0 0.0
  %1067 = vmatpush1.msra.mxu0 0.0
  %1068 = vmatprep.subr.mxu0 0.0
  %1069 = vmatpush1.msra.mxu0 0.0
  %1070 = vmatprep.subr.mxu0 0.0
  %1071 = vmatpush1.msra.mxu0 0.0
  %1072 = vmatprep.subr.mxu0 0.0
  %1073 = vmatpush1.msra.mxu0 0.0
  %1074 = vmatprep.subr.mxu0 0.0
  %1075 = vmatpush1.msra.mxu0 0.0
  %1076 = vmatprep.mubr.f32.mxu0 0.0
  %1077 = vmatmul.mubr.f32.gmra.mrb[0].mxu0 %v797
  %v1078 = vpop.f32.mrb[0].mxu0
  %v1079 = vadd.f32 0.0, %v1078
  %v1080 = vpop.f32.mrb[0].mxu0
  %v1081 = vadd.f32 0.0, %v1080
  %1082 = vdwg.mxu0
  %1083 = vmatprep.subr.mxu0 0.0
  %1084 = vmatpush1.msra.mxu0 %v125
  %1085 = vmatprep.subr.mxu0 0.0
  %1086 = vmatpush1.msra.mxu0 %v212
  %1087 = vmatprep.subr.mxu0 0.0
  %1088 = vmatpush1.msra.mxu0 %v299
  %1089 = vmatprep.subr.mxu0 0.0
  %1090 = vmatpush1.msra.mxu0 %v386
  %1091 = vmatprep.subr.mxu0 0.0
  %1092 = vmatpush1.msra.mxu0 %v445
  %1093 = vmatprep.subr.mxu0 0.0
  %1094 = vmatpush1.msra.mxu0 %v532
  %1095 = vmatprep.subr.mxu0 0.0
  %1096 = vmatpush1.msra.mxu0 %v619
  %1097 = vmatprep.subr.mxu0 0.0
  %1098 = vmatpush1.msra.mxu0 %v706
  %1099 = vmatprep.subr.mxu0 0.0
  %1100 = vmatpush1.msra.mxu0 %v793
  %1101 = vmatprep.subr.mxu0 0.0
  %1102 = vmatpush1.msra.mxu0 0.0
  %1103 = vmatprep.subr.mxu0 0.0
  %1104 = vmatpush1.msra.mxu0 0.0
  %1105 = vmatprep.subr.mxu0 0.0
  %1106 = vmatpush1.msra.mxu0 0.0
  %1107 = vmatprep.subr.mxu0 0.0
  %1108 = vmatpush1.msra.mxu0 0.0
  %1109 = vmatprep.subr.mxu0 0.0
  %1110 = vmatpush1.msra.mxu0 0.0
  %1111 = vmatprep.subr.mxu0 0.0
  %1112 = vmatpush1.msra.mxu0 0.0
  %1113 = vmatprep.subr.mxu0 0.0
  %1114 = vmatpush1.msra.mxu0 0.0
  %1115 = vmatprep.subr.mxu0 0.0
  %1116 = vmatpush1.msra.mxu0 0.0
  %1117 = vmatprep.subr.mxu0 0.0
  %1118 = vmatpush1.msra.mxu0 0.0
  %1119 = vmatprep.subr.mxu0 0.0
  %1120 = vmatpush1.msra.mxu0 0.0
  %1121 = vmatprep.subr.mxu0 0.0
  %1122 = vmatpush1.msra.mxu0 0.0
  %1123 = vmatprep.subr.mxu0 0.0
  %1124 = vmatpush1.msra.mxu0 0.0
  %1125 = vmatprep.subr.mxu0 0.0
  %1126 = vmatpush1.msra.mxu0 0.0
  %1127 = vmatprep.subr.mxu0 0.0
  %1128 = vmatpush1.msra.mxu0 0.0
  %1129 = vmatprep.subr.mxu0 0.0
  %1130 = vmatpush1.msra.mxu0 0.0
  %1131 = vmatprep.subr.mxu0 0.0
  %1132 = vmatpush1.msra.mxu0 0.0
  %1133 = vmatprep.subr.mxu0 0.0
  %1134 = vmatpush1.msra.mxu0 0.0
  %1135 = vmatprep.subr.mxu0 0.0
  %1136 = vmatpush1.msra.mxu0 0.0
  %1137 = vmatprep.subr.mxu0 0.0
  %1138 = vmatpush1.msra.mxu0 0.0
  %1139 = vmatprep.subr.mxu0 0.0
  %1140 = vmatpush1.msra.mxu0 0.0
  %1141 = vmatprep.subr.mxu0 0.0
  %1142 = vmatpush1.msra.mxu0 0.0
  %1143 = vmatprep.subr.mxu0 0.0
  %1144 = vmatpush1.msra.mxu0 0.0
  %1145 = vmatprep.subr.mxu0 0.0
  %1146 = vmatpush1.msra.mxu0 0.0
  %1147 = vmatprep.mubr.f32.mxu0 0.0
  %1148 = vmatmul.mubr.f32.gmra.mrb[0].mxu0 %v797
  %v1149 = vpop.f32.mrb[0].mxu0
  %v1150 = vadd.f32 0.0, %v1149
  %v1151 = vpop.f32.mrb[0].mxu0
  %1152 = vdwg.mxu0
  %v1153 = vadd.f32 %v866, %v868
  %v1154 = vadd.f32 %v1153, %v937
  %v1155 = vadd.f32 %v1154, %v939
  %v1156 = vadd.f32 %v1155, %v1008
  %v1157 = vadd.f32 %v1156, %v1010
  %v1158 = vadd.f32 %v1157, %v1079
  %v1159 = vadd.f32 %v1158, %v1081
  %v1160 = vadd.f32 %v1159, %v1150
  %1161 = vadd.xlane.f32.xlu0 %v1160
  %v1162 = vpop.xlane.xlu0 %1161
  %v1163 = vmul.f32 %v1162, 0.00086805556
  %v1164 = vsub.f32 %v866, %v1163
  %v1165 = vsub.f32 %v868, %v1163
  %v1166 = vsub.f32 %v937, %v1163
  %v1167 = vsub.f32 %v939, %v1163
  %v1168 = vsub.f32 %v1008, %v1163
  %v1169 = vsub.f32 %v1010, %v1163
  %v1170 = vsub.f32 %v1079, %v1163
  %v1171 = vsub.f32 %v1081, %v1163
  %v1172 = vsub.f32 %v1150, %v1163
  %v1173 = vmul.f32 %v1164, %v1164
  %v1174 = vmul.f32 %v1165, %v1165
  %v1175 = vmul.f32 %v1166, %v1166
  %v1176 = vmul.f32 %v1167, %v1167
  %v1177 = vmul.f32 %v1168, %v1168
  %v1178 = vmul.f32 %v1169, %v1169
  %v1179 = vmul.f32 %v1170, %v1170
  %v1180 = vmul.f32 %v1171, %v1171
  %v1181 = vmul.f32 %v1172, %v1172
  %v1182 = vadd.f32 %v1173, %v1174
  %v1183 = vadd.f32 %v1182, %v1175
  %v1184 = vadd.f32 %v1183, %v1176
  %v1185 = vadd.f32 %v1184, %v1177
  %v1186 = vadd.f32 %v1185, %v1178
  %v1187 = vadd.f32 %v1186, %v1179
  %v1188 = vadd.f32 %v1187, %v1180
  %v1189 = vadd.f32 %v1188, %v1181
  %1190 = vadd.xlane.f32.xlu0 %v1189
  %v1191 = vpop.xlane.xlu0 %1190
  %v1192 = vmul.f32 %v1191, 0.00086805556
  %v1193 = vld [vmem:[%s3] sm:$0xff]
  %v1194 = vadd.f32 %v1192, 1e-05
  %v1195 = vrsqrt.pop %v1194
  %v1196 = vmul.f32 %v1193, %v1195
  %1198 = vset.pattern.permute.xlu0 0
  %1199 = vperm.xlu0 %1198, %v1196
  %v1200 = vpop.permute.xlu0 %1199
  %v1202 = vmul.f32 %v1164, %v1200
  %v1203 = vmul.f32 %v1165, %v1200
  %v1204 = vmul.f32 %v1166, %v1200
  %v1205 = vmul.f32 %v1167, %v1200
  %v1206 = vmul.f32 %v1168, %v1200
  %v1207 = vmul.f32 %v1169, %v1200
  %v1208 = vmul.f32 %v1170, %v1200
  %v1209 = vmul.f32 %v1171, %v1200
  %v1210 = vmul.f32 %v1172, %v1200
  %v1211 = vld [vmem:[%s4] sm:$0xff]
  %1213 = vset.pattern.permute.xlu0 0
  %1214 = vperm.xlu0 %1213, %v1211
  %v1215 = vpop.permute.xlu0 %1214
  %v1217 = vadd.f32 %v1202, %v1215
  %v1218 = vadd.f32 %v1203, %v1215
  %v1219 = vadd.f32 %v1204, %v1215
  %v1220 = vadd.f32 %v1205, %v1215
  %v1221 = vadd.f32 %v1206, %v1215
  %v1222 = vadd.f32 %v1207, %v1215
  %v1223 = vadd.f32 %v1208, %v1215
  %v1224 = vadd.f32 %v1209, %v1215
  %v1225 = vadd.f32 %v1210, %v1215
  %v1226 = vmax.f32 %v1217, 0.0
  %v1227 = vmax.f32 %v1218, 0.0
  %v1228 = vmax.f32 %v1219, 0.0
  %v1229 = vmax.f32 %v1220, 0.0
  %v1230 = vmax.f32 %v1221, 0.0
  %v1231 = vmax.f32 %v1222, 0.0
  %v1232 = vmax.f32 %v1223, 0.0
  %v1233 = vmax.f32 %v1224, 0.0
  %v1234 = vmax.f32 %v1225, 0.0
  %1235 = vrot.lane.b32.xlu0 %v1226, 25
  %v1236 = vpop.permute.xlu0 %1235
  %1237 = vrot.lane.b32.xlu0 %v1227, 25
  %v1238 = vpop.permute.xlu0 %1237
  %1239 = vrot.lane.b32.xlu0 %v1228, 25
  %v1240 = vpop.permute.xlu0 %1239
  %1241 = vrot.lane.b32.xlu0 %v1229, 25
  %v1242 = vpop.permute.xlu0 %1241
  %1243 = vrot.lane.b32.xlu0 %v1230, 25
  %v1244 = vpop.permute.xlu0 %1243
  %1245 = vrot.lane.b32.xlu0 %v1231, 25
  %v1246 = vpop.permute.xlu0 %1245
  %1247 = vrot.lane.b32.xlu0 %v1232, 25
  %v1248 = vpop.permute.xlu0 %1247
  %1249 = vrot.lane.b32.xlu0 %v1233, 25
  %v1250 = vpop.permute.xlu0 %1249
  %1251 = vrot.lane.b32.xlu0 %v1234, 25
  %v1252 = vpop.permute.xlu0 %1251
  %v1253 = vsel %vm58, %v1250, %v1252
  %v1254 = vsel %vm58, %v1248, %v1250
  %v1255 = vsel %vm58, %v1246, %v1248
  %v1256 = vsel %vm58, %v1244, %v1246
  %v1257 = vsel %vm58, %v1242, %v1244
  %v1258 = vsel %vm58, %v1240, %v1242
  %v1259 = vsel %vm58, %v1238, %v1240
  %v1260 = vsel %vm58, %v1236, %v1238
  %v1261 = vsel %vm58, %v1252, %v1236
  %v1262 = vmul.f32 %v1261, %v75
  %v1263 = vmul.f32 %v1260, %v79
  %v1264 = vmul.f32 %v1259, %v83
  %v1265 = vmul.f32 %v1258, %v87
  %v1266 = vmul.f32 %v1257, %v91
  %v1267 = vmul.f32 %v1256, %v95
  %v1268 = vmul.f32 %v1255, %v99
  %v1269 = vmul.f32 %v1254, %v103
  %v1270 = vmul.f32 %v1253, %v107
  %1271 = vrot.lane.b32.xlu0 %v1226, 24
  %v1272 = vpop.permute.xlu0 %1271
  %1273 = vrot.lane.b32.xlu0 %v1227, 24
  %v1274 = vpop.permute.xlu0 %1273
  %1275 = vrot.lane.b32.xlu0 %v1228, 24
  %v1276 = vpop.permute.xlu0 %1275
  %1277 = vrot.lane.b32.xlu0 %v1229, 24
  %v1278 = vpop.permute.xlu0 %1277
  %1279 = vrot.lane.b32.xlu0 %v1230, 24
  %v1280 = vpop.permute.xlu0 %1279
  %1281 = vrot.lane.b32.xlu0 %v1231, 24
  %v1282 = vpop.permute.xlu0 %1281
  %1283 = vrot.lane.b32.xlu0 %v1232, 24
  %v1284 = vpop.permute.xlu0 %1283
  %1285 = vrot.lane.b32.xlu0 %v1233, 24
  %v1286 = vpop.permute.xlu0 %1285
  %1287 = vrot.lane.b32.xlu0 %v1234, 24
  %v1288 = vpop.permute.xlu0 %1287
  %v1289 = vsel %vm144, %v1286, %v1288
  %v1290 = vsel %vm144, %v1284, %v1286
  %v1291 = vsel %vm144, %v1282, %v1284
  %v1292 = vsel %vm144, %v1280, %v1282
  %v1293 = vsel %vm144, %v1278, %v1280
  %v1294 = vsel %vm144, %v1276, %v1278
  %v1295 = vsel %vm144, %v1274, %v1276
  %v1296 = vsel %vm144, %v1272, %v1274
  %v1297 = vsel %vm144, %v1288, %v1272
  %v1298 = vmul.f32 %v1297, %v162
  %v1299 = vmul.f32 %v1296, %v166
  %v1300 = vmul.f32 %v1295, %v170
  %v1301 = vmul.f32 %v1294, %v174
  %v1302 = vmul.f32 %v1293, %v178
  %v1303 = vmul.f32 %v1292, %v182
  %v1304 = vmul.f32 %v1291, %v186
  %v1305 = vmul.f32 %v1290, %v190
  %v1306 = vmul.f32 %v1289, %v194
  %1307 = vrot.lane.b32.xlu0 %v1226, 23
  %v1308 = vpop.permute.xlu0 %1307
  %1309 = vrot.lane.b32.xlu0 %v1227, 23
  %v1310 = vpop.permute.xlu0 %1309
  %1311 = vrot.lane.b32.xlu0 %v1228, 23
  %v1312 = vpop.permute.xlu0 %1311
  %1313 = vrot.lane.b32.xlu0 %v1229, 23
  %v1314 = vpop.permute.xlu0 %1313
  %1315 = vrot.lane.b32.xlu0 %v1230, 23
  %v1316 = vpop.permute.xlu0 %1315
  %1317 = vrot.lane.b32.xlu0 %v1231, 23
  %v1318 = vpop.permute.xlu0 %1317
  %1319 = vrot.lane.b32.xlu0 %v1232, 23
  %v1320 = vpop.permute.xlu0 %1319
  %1321 = vrot.lane.b32.xlu0 %v1233, 23
  %v1322 = vpop.permute.xlu0 %1321
  %1323 = vrot.lane.b32.xlu0 %v1234, 23
  %v1324 = vpop.permute.xlu0 %1323
  %v1325 = vsel %vm231, %v1322, %v1324
  %v1326 = vsel %vm231, %v1320, %v1322
  %v1327 = vsel %vm231, %v1318, %v1320
  %v1328 = vsel %vm231, %v1316, %v1318
  %v1329 = vsel %vm231, %v1314, %v1316
  %v1330 = vsel %vm231, %v1312, %v1314
  %v1331 = vsel %vm231, %v1310, %v1312
  %v1332 = vsel %vm231, %v1308, %v1310
  %v1333 = vsel %vm231, %v1324, %v1308
  %v1334 = vmul.f32 %v1333, %v249
  %v1335 = vmul.f32 %v1332, %v253
  %v1336 = vmul.f32 %v1331, %v257
  %v1337 = vmul.f32 %v1330, %v261
  %v1338 = vmul.f32 %v1329, %v265
  %v1339 = vmul.f32 %v1328, %v269
  %v1340 = vmul.f32 %v1327, %v273
  %v1341 = vmul.f32 %v1326, %v277
  %v1342 = vmul.f32 %v1325, %v281
  %1343 = vrot.lane.b32.xlu0 %v1226, 1
  %v1344 = vpop.permute.xlu0 %1343
  %1345 = vrot.lane.b32.xlu0 %v1227, 1
  %v1346 = vpop.permute.xlu0 %1345
  %1347 = vrot.lane.b32.xlu0 %v1228, 1
  %v1348 = vpop.permute.xlu0 %1347
  %1349 = vrot.lane.b32.xlu0 %v1229, 1
  %v1350 = vpop.permute.xlu0 %1349
  %1351 = vrot.lane.b32.xlu0 %v1230, 1
  %v1352 = vpop.permute.xlu0 %1351
  %1353 = vrot.lane.b32.xlu0 %v1231, 1
  %v1354 = vpop.permute.xlu0 %1353
  %1355 = vrot.lane.b32.xlu0 %v1232, 1
  %v1356 = vpop.permute.xlu0 %1355
  %1357 = vrot.lane.b32.xlu0 %v1233, 1
  %v1358 = vpop.permute.xlu0 %1357
  %1359 = vrot.lane.b32.xlu0 %v1234, 1
  %v1360 = vpop.permute.xlu0 %1359
  %v1361 = vsel %vm318, %v1358, %v1360
  %v1362 = vsel %vm318, %v1356, %v1358
  %v1363 = vsel %vm318, %v1354, %v1356
  %v1364 = vsel %vm318, %v1352, %v1354
  %v1365 = vsel %vm318, %v1350, %v1352
  %v1366 = vsel %vm318, %v1348, %v1350
  %v1367 = vsel %vm318, %v1346, %v1348
  %v1368 = vsel %vm318, %v1344, %v1346
  %v1369 = vsel %vm318, %v1360, %v1344
  %v1370 = vmul.f32 %v1369, %v336
  %v1371 = vmul.f32 %v1368, %v340
  %v1372 = vmul.f32 %v1367, %v344
  %v1373 = vmul.f32 %v1366, %v348
  %v1374 = vmul.f32 %v1365, %v352
  %v1375 = vmul.f32 %v1364, %v356
  %v1376 = vmul.f32 %v1363, %v360
  %v1377 = vmul.f32 %v1362, %v364
  %v1378 = vmul.f32 %v1361, %v368
  %v1379 = vmul.f32 %v1226, %v395
  %v1380 = vmul.f32 %v1227, %v399
  %v1381 = vmul.f32 %v1228, %v403
  %v1382 = vmul.f32 %v1229, %v407
  %v1383 = vmul.f32 %v1230, %v411
  %v1384 = vmul.f32 %v1231, %v415
  %v1385 = vmul.f32 %v1232, %v419
  %v1386 = vmul.f32 %v1233, %v423
  %v1387 = vmul.f32 %v1234, %v427
  %1388 = vrot.lane.b32.xlu0 %v1226, 127
  %v1389 = vpop.permute.xlu0 %1388
  %1390 = vrot.lane.b32.xlu0 %v1227, 127
  %v1391 = vpop.permute.xlu0 %1390
  %1392 = vrot.lane.b32.xlu0 %v1228, 127
  %v1393 = vpop.permute.xlu0 %1392
  %1394 = vrot.lane.b32.xlu0 %v1229, 127
  %v1395 = vpop.permute.xlu0 %1394
  %1396 = vrot.lane.b32.xlu0 %v1230, 127
  %v1397 = vpop.permute.xlu0 %1396
  %1398 = vrot.lane.b32.xlu0 %v1231, 127
  %v1399 = vpop.permute.xlu0 %1398
  %1400 = vrot.lane.b32.xlu0 %v1232, 127
  %v1401 = vpop.permute.xlu0 %1400
  %1402 = vrot.lane.b32.xlu0 %v1233, 127
  %v1403 = vpop.permute.xlu0 %1402
  %1404 = vrot.lane.b32.xlu0 %v1234, 127
  %v1405 = vpop.permute.xlu0 %1404
  %v1406 = vsel %vm464, %v1403, %v1405
  %v1407 = vsel %vm464, %v1401, %v1403
  %v1408 = vsel %vm464, %v1399, %v1401
  %v1409 = vsel %vm464, %v1397, %v1399
  %v1410 = vsel %vm464, %v1395, %v1397
  %v1411 = vsel %vm464, %v1393, %v1395
  %v1412 = vsel %vm464, %v1391, %v1393
  %v1413 = vsel %vm464, %v1389, %v1391
  %v1414 = vsel %vm464, %v1405, %v1389
  %v1415 = vmul.f32 %v1413, %v482
  %v1416 = vmul.f32 %v1412, %v486
  %v1417 = vmul.f32 %v1411, %v490
  %v1418 = vmul.f32 %v1410, %v494
  %v1419 = vmul.f32 %v1409, %v498
  %v1420 = vmul.f32 %v1408, %v502
  %v1421 = vmul.f32 %v1407, %v506
  %v1422 = vmul.f32 %v1406, %v510
  %v1423 = vmul.f32 %v1414, %v514
  %1424 = vrot.lane.b32.xlu0 %v1226, 105
  %v1425 = vpop.permute.xlu0 %1424
  %1426 = vrot.lane.b32.xlu0 %v1227, 105
  %v1427 = vpop.permute.xlu0 %1426
  %1428 = vrot.lane.b32.xlu0 %v1228, 105
  %v1429 = vpop.permute.xlu0 %1428
  %1430 = vrot.lane.b32.xlu0 %v1229, 105
  %v1431 = vpop.permute.xlu0 %1430
  %1432 = vrot.lane.b32.xlu0 %v1230, 105
  %v1433 = vpop.permute.xlu0 %1432
  %1434 = vrot.lane.b32.xlu0 %v1231, 105
  %v1435 = vpop.permute.xlu0 %1434
  %1436 = vrot.lane.b32.xlu0 %v1232, 105
  %v1437 = vpop.permute.xlu0 %1436
  %1438 = vrot.lane.b32.xlu0 %v1233, 105
  %v1439 = vpop.permute.xlu0 %1438
  %1440 = vrot.lane.b32.xlu0 %v1234, 105
  %v1441 = vpop.permute.xlu0 %1440
  %v1442 = vsel %vm551, %v1439, %v1441
  %v1443 = vsel %vm551, %v1437, %v1439
  %v1444 = vsel %vm551, %v1435, %v1437
  %v1445 = vsel %vm551, %v1433, %v1435
  %v1446 = vsel %vm551, %v1431, %v1433
  %v1447 = vsel %vm551, %v1429, %v1431
  %v1448 = vsel %vm551, %v1427, %v1429
  %v1449 = vsel %vm551, %v1425, %v1427
  %v1450 = vsel %vm551, %v1441, %v1425
  %v1451 = vmul.f32 %v1449, %v569
  %v1452 = vmul.f32 %v1448, %v573
  %v1453 = vmul.f32 %v1447, %v577
  %v1454 = vmul.f32 %v1446, %v581
  %v1455 = vmul.f32 %v1445, %v585
  %v1456 = vmul.f32 %v1444, %v589
  %v1457 = vmul.f32 %v1443, %v593
  %v1458 = vmul.f32 %v1442, %v597
  %v1459 = vmul.f32 %v1450, %v601
  %1460 = vrot.lane.b32.xlu0 %v1226, 104
  %v1461 = vpop.permute.xlu0 %1460
  %1462 = vrot.lane.b32.xlu0 %v1227, 104
  %v1463 = vpop.permute.xlu0 %1462
  %1464 = vrot.lane.b32.xlu0 %v1228, 104
  %v1465 = vpop.permute.xlu0 %1464
  %1466 = vrot.lane.b32.xlu0 %v1229, 104
  %v1467 = vpop.permute.xlu0 %1466
  %1468 = vrot.lane.b32.xlu0 %v1230, 104
  %v1469 = vpop.permute.xlu0 %1468
  %1470 = vrot.lane.b32.xlu0 %v1231, 104
  %v1471 = vpop.permute.xlu0 %1470
  %1472 = vrot.lane.b32.xlu0 %v1232, 104
  %v1473 = vpop.permute.xlu0 %1472
  %1474 = vrot.lane.b32.xlu0 %v1233, 104
  %v1475 = vpop.permute.xlu0 %1474
  %1476 = vrot.lane.b32.xlu0 %v1234, 104
  %v1477 = vpop.permute.xlu0 %1476
  %v1478 = vsel %vm638, %v1475, %v1477
  %v1479 = vsel %vm638, %v1473, %v1475
  %v1480 = vsel %vm638, %v1471, %v1473
  %v1481 = vsel %vm638, %v1469, %v1471
  %v1482 = vsel %vm638, %v1467, %v1469
  %v1483 = vsel %vm638, %v1465, %v1467
  %v1484 = vsel %vm638, %v1463, %v1465
  %v1485 = vsel %vm638, %v1461, %v1463
  %v1486 = vsel %vm638, %v1477, %v1461
  %v1487 = vmul.f32 %v1485, %v656
  %v1488 = vmul.f32 %v1484, %v660
  %v1489 = vmul.f32 %v1483, %v664
  %v1490 = vmul.f32 %v1482, %v668
  %v1491 = vmul.f32 %v1481, %v672
  %v1492 = vmul.f32 %v1480, %v676
  %v1493 = vmul.f32 %v1479, %v680
  %v1494 = vmul.f32 %v1478, %v684
  %v1495 = vmul.f32 %v1486, %v688
  %1496 = vrot.lane.b32.xlu0 %v1226, 103
  %v1497 = vpop.permute.xlu0 %1496
  %1498 = vrot.lane.b32.xlu0 %v1227, 103
  %v1499 = vpop.permute.xlu0 %1498
  %1500 = vrot.lane.b32.xlu0 %v1228, 103
  %v1501 = vpop.permute.xlu0 %1500
  %1502 = vrot.lane.b32.xlu0 %v1229, 103
  %v1503 = vpop.permute.xlu0 %1502
  %1504 = vrot.lane.b32.xlu0 %v1230, 103
  %v1505 = vpop.permute.xlu0 %1504
  %1506 = vrot.lane.b32.xlu0 %v1231, 103
  %v1507 = vpop.permute.xlu0 %1506
  %1508 = vrot.lane.b32.xlu0 %v1232, 103
  %v1509 = vpop.permute.xlu0 %1508
  %1510 = vrot.lane.b32.xlu0 %v1233, 103
  %v1511 = vpop.permute.xlu0 %1510
  %1512 = vrot.lane.b32.xlu0 %v1234, 103
  %v1513 = vpop.permute.xlu0 %1512
  %v1514 = vsel %vm725, %v1511, %v1513
  %v1515 = vsel %vm725, %v1509, %v1511
  %v1516 = vsel %vm725, %v1507, %v1509
  %v1517 = vsel %vm725, %v1505, %v1507
  %v1518 = vsel %vm725, %v1503, %v1505
  %v1519 = vsel %vm725, %v1501, %v1503
  %v1520 = vsel %vm725, %v1499, %v1501
  %v1521 = vsel %vm725, %v1497, %v1499
  %v1522 = vsel %vm725, %v1513, %v1497
  %v1523 = vmul.f32 %v1521, %v743
  %v1524 = vmul.f32 %v1520, %v747
  %v1525 = vmul.f32 %v1519, %v751
  %v1526 = vmul.f32 %v1518, %v755
  %v1527 = vmul.f32 %v1517, %v759
  %v1528 = vmul.f32 %v1516, %v763
  %v1529 = vmul.f32 %v1515, %v767
  %v1530 = vmul.f32 %v1514, %v771
  %v1531 = vmul.f32 %v1522, %v775
  %v1532 = vld [vmem:[%s5] sm:$0xff]
  %v1534 = vsel %vm795, %v1532, 0
  %1536 = vmatprep.subr.mxu0 %v1263
  %1537 = vmatpush1.msra.mxu0 %v1262
  %1538 = vmatprep.subr.mxu0 %v1299
  %1539 = vmatpush1.msra.mxu0 %v1298
  %1540 = vmatprep.subr.mxu0 %v1335
  %1541 = vmatpush1.msra.mxu0 %v1334
  %1542 = vmatprep.subr.mxu0 %v1371
  %1543 = vmatpush1.msra.mxu0 %v1370
  %1544 = vmatprep.subr.mxu0 %v1380
  %1545 = vmatpush1.msra.mxu0 %v1379
  %1546 = vmatprep.subr.mxu0 %v1416
  %1547 = vmatpush1.msra.mxu0 %v1415
  %1548 = vmatprep.subr.mxu0 %v1452
  %1549 = vmatpush1.msra.mxu0 %v1451
  %1550 = vmatprep.subr.mxu0 %v1488
  %1551 = vmatpush1.msra.mxu0 %v1487
  %1552 = vmatprep.subr.mxu0 %v1524
  %1553 = vmatpush1.msra.mxu0 %v1523
  %1554 = vmatprep.subr.mxu0 0.0
  %1555 = vmatpush1.msra.mxu0 0.0
  %1556 = vmatprep.subr.mxu0 0.0
  %1557 = vmatpush1.msra.mxu0 0.0
  %1558 = vmatprep.subr.mxu0 0.0
  %1559 = vmatpush1.msra.mxu0 0.0
  %1560 = vmatprep.subr.mxu0 0.0
  %1561 = vmatpush1.msra.mxu0 0.0
  %1562 = vmatprep.subr.mxu0 0.0
  %1563 = vmatpush1.msra.mxu0 0.0
  %1564 = vmatprep.subr.mxu0 0.0
  %1565 = vmatpush1.msra.mxu0 0.0
  %1566 = vmatprep.subr.mxu0 0.0
  %1567 = vmatpush1.msra.mxu0 0.0
  %1568 = vmatprep.subr.mxu0 0.0
  %1569 = vmatpush1.msra.mxu0 0.0
  %1570 = vmatprep.subr.mxu0 0.0
  %1571 = vmatpush1.msra.mxu0 0.0
  %1572 = vmatprep.subr.mxu0 0.0
  %1573 = vmatpush1.msra.mxu0 0.0
  %1574 = vmatprep.subr.mxu0 0.0
  %1575 = vmatpush1.msra.mxu0 0.0
  %1576 = vmatprep.subr.mxu0 0.0
  %1577 = vmatpush1.msra.mxu0 0.0
  %1578 = vmatprep.subr.mxu0 0.0
  %1579 = vmatpush1.msra.mxu0 0.0
  %1580 = vmatprep.subr.mxu0 0.0
  %1581 = vmatpush1.msra.mxu0 0.0
  %1582 = vmatprep.subr.mxu0 0.0
  %1583 = vmatpush1.msra.mxu0 0.0
  %1584 = vmatprep.subr.mxu0 0.0
  %1585 = vmatpush1.msra.mxu0 0.0
  %1586 = vmatprep.subr.mxu0 0.0
  %1587 = vmatpush1.msra.mxu0 0.0
  %1588 = vmatprep.subr.mxu0 0.0
  %1589 = vmatpush1.msra.mxu0 0.0
  %1590 = vmatprep.subr.mxu0 0.0
  %1591 = vmatpush1.msra.mxu0 0.0
  %1592 = vmatprep.subr.mxu0 0.0
  %1593 = vmatpush1.msra.mxu0 0.0
  %1594 = vmatprep.subr.mxu0 0.0
  %1595 = vmatpush1.msra.mxu0 0.0
  %1596 = vmatprep.subr.mxu0 0.0
  %1597 = vmatpush1.msra.mxu0 0.0
  %1598 = vmatprep.subr.mxu0 0.0
  %1599 = vmatpush1.msra.mxu0 0.0
  %1600 = vmatprep.mubr.f32.mxu0 0.0
  %1601 = vmatmul.mubr.f32.gmra.mrb[0].mxu0 %v1534
  %v1602 = vpop.f32.mrb[0].mxu0
  %v1603 = vadd.f32 0.0, %v1602
  %v1604 = vpop.f32.mrb[0].mxu0
  %v1605 = vadd.f32 0.0, %v1604
  %1606 = vdwg.mxu0
  %1607 = vmatprep.subr.mxu0 %v1265
  %1608 = vmatpush1.msra.mxu0 %v1264
  %1609 = vmatprep.subr.mxu0 %v1301
  %1610 = vmatpush1.msra.mxu0 %v1300
  %1611 = vmatprep.subr.mxu0 %v1337
  %1612 = vmatpush1.msra.mxu0 %v1336
  %1613 = vmatprep.subr.mxu0 %v1373
  %1614 = vmatpush1.msra.mxu0 %v1372
  %1615 = vmatprep.subr.mxu0 %v1382
  %1616 = vmatpush1.msra.mxu0 %v1381
  %1617 = vmatprep.subr.mxu0 %v1418
  %1618 = vmatpush1.msra.mxu0 %v1417
  %1619 = vmatprep.subr.mxu0 %v1454
  %1620 = vmatpush1.msra.mxu0 %v1453
  %1621 = vmatprep.subr.mxu0 %v1490
  %1622 = vmatpush1.msra.mxu0 %v1489
  %1623 = vmatprep.subr.mxu0 %v1526
  %1624 = vmatpush1.msra.mxu0 %v1525
  %1625 = vmatprep.subr.mxu0 0.0
  %1626 = vmatpush1.msra.mxu0 0.0
  %1627 = vmatprep.subr.mxu0 0.0
  %1628 = vmatpush1.msra.mxu0 0.0
  %1629 = vmatprep.subr.mxu0 0.0
  %1630 = vmatpush1.msra.mxu0 0.0
  %1631 = vmatprep.subr.mxu0 0.0
  %1632 = vmatpush1.msra.mxu0 0.0
  %1633 = vmatprep.subr.mxu0 0.0
  %1634 = vmatpush1.msra.mxu0 0.0
  %1635 = vmatprep.subr.mxu0 0.0
  %1636 = vmatpush1.msra.mxu0 0.0
  %1637 = vmatprep.subr.mxu0 0.0
  %1638 = vmatpush1.msra.mxu0 0.0
  %1639 = vmatprep.subr.mxu0 0.0
  %1640 = vmatpush1.msra.mxu0 0.0
  %1641 = vmatprep.subr.mxu0 0.0
  %1642 = vmatpush1.msra.mxu0 0.0
  %1643 = vmatprep.subr.mxu0 0.0
  %1644 = vmatpush1.msra.mxu0 0.0
  %1645 = vmatprep.subr.mxu0 0.0
  %1646 = vmatpush1.msra.mxu0 0.0
  %1647 = vmatprep.subr.mxu0 0.0
  %1648 = vmatpush1.msra.mxu0 0.0
  %1649 = vmatprep.subr.mxu0 0.0
  %1650 = vmatpush1.msra.mxu0 0.0
  %1651 = vmatprep.subr.mxu0 0.0
  %1652 = vmatpush1.msra.mxu0 0.0
  %1653 = vmatprep.subr.mxu0 0.0
  %1654 = vmatpush1.msra.mxu0 0.0
  %1655 = vmatprep.subr.mxu0 0.0
  %1656 = vmatpush1.msra.mxu0 0.0
  %1657 = vmatprep.subr.mxu0 0.0
  %1658 = vmatpush1.msra.mxu0 0.0
  %1659 = vmatprep.subr.mxu0 0.0
  %1660 = vmatpush1.msra.mxu0 0.0
  %1661 = vmatprep.subr.mxu0 0.0
  %1662 = vmatpush1.msra.mxu0 0.0
  %1663 = vmatprep.subr.mxu0 0.0
  %1664 = vmatpush1.msra.mxu0 0.0
  %1665 = vmatprep.subr.mxu0 0.0
  %1666 = vmatpush1.msra.mxu0 0.0
  %1667 = vmatprep.subr.mxu0 0.0
  %1668 = vmatpush1.msra.mxu0 0.0
  %1669 = vmatprep.subr.mxu0 0.0
  %1670 = vmatpush1.msra.mxu0 0.0
  %1671 = vmatprep.mubr.f32.mxu0 0.0
  %1672 = vmatmul.mubr.f32.gmra.mrb[0].mxu0 %v1534
  %v1673 = vpop.f32.mrb[0].mxu0
  %v1674 = vadd.f32 0.0, %v1673
  %v1675 = vpop.f32.mrb[0].mxu0
  %v1676 = vadd.f32 0.0, %v1675
  %1677 = vdwg.mxu0
  %1678 = vmatprep.subr.mxu0 %v1267
  %1679 = vmatpush1.msra.mxu0 %v1266
  %1680 = vmatprep.subr.mxu0 %v1303
  %1681 = vmatpush1.msra.mxu0 %v1302
  %1682 = vmatprep.subr.mxu0 %v1339
  %1683 = vmatpush1.msra.mxu0 %v1338
  %1684 = vmatprep.subr.mxu0 %v1375
  %1685 = vmatpush1.msra.mxu0 %v1374
  %1686 = vmatprep.subr.mxu0 %v1384
  %1687 = vmatpush1.msra.mxu0 %v1383
  %1688 = vmatprep.subr.mxu0 %v1420
  %1689 = vmatpush1.msra.mxu0 %v1419
  %1690 = vmatprep.subr.mxu0 %v1456
  %1691 = vmatpush1.msra.mxu0 %v1455
  %1692 = vmatprep.subr.mxu0 %v1492
  %1693 = vmatpush1.msra.mxu0 %v1491
  %1694 = vmatprep.subr.mxu0 %v1528
  %1695 = vmatpush1.msra.mxu0 %v1527
  %1696 = vmatprep.subr.mxu0 0.0
  %1697 = vmatpush1.msra.mxu0 0.0
  %1698 = vmatprep.subr.mxu0 0.0
  %1699 = vmatpush1.msra.mxu0 0.0
  %1700 = vmatprep.subr.mxu0 0.0
  %1701 = vmatpush1.msra.mxu0 0.0
  %1702 = vmatprep.subr.mxu0 0.0
  %1703 = vmatpush1.msra.mxu0 0.0
  %1704 = vmatprep.subr.mxu0 0.0
  %1705 = vmatpush1.msra.mxu0 0.0
  %1706 = vmatprep.subr.mxu0 0.0
  %1707 = vmatpush1.msra.mxu0 0.0
  %1708 = vmatprep.subr.mxu0 0.0
  %1709 = vmatpush1.msra.mxu0 0.0
  %1710 = vmatprep.subr.mxu0 0.0
  %1711 = vmatpush1.msra.mxu0 0.0
  %1712 = vmatprep.subr.mxu0 0.0
  %1713 = vmatpush1.msra.mxu0 0.0
  %1714 = vmatprep.subr.mxu0 0.0
  %1715 = vmatpush1.msra.mxu0 0.0
  %1716 = vmatprep.subr.mxu0 0.0
  %1717 = vmatpush1.msra.mxu0 0.0
  %1718 = vmatprep.subr.mxu0 0.0
  %1719 = vmatpush1.msra.mxu0 0.0
  %1720 = vmatprep.subr.mxu0 0.0
  %1721 = vmatpush1.msra.mxu0 0.0
  %1722 = vmatprep.subr.mxu0 0.0
  %1723 = vmatpush1.msra.mxu0 0.0
  %1724 = vmatprep.subr.mxu0 0.0
  %1725 = vmatpush1.msra.mxu0 0.0
  %1726 = vmatprep.subr.mxu0 0.0
  %1727 = vmatpush1.msra.mxu0 0.0
  %1728 = vmatprep.subr.mxu0 0.0
  %1729 = vmatpush1.msra.mxu0 0.0
  %1730 = vmatprep.subr.mxu0 0.0
  %1731 = vmatpush1.msra.mxu0 0.0
  %1732 = vmatprep.subr.mxu0 0.0
  %1733 = vmatpush1.msra.mxu0 0.0
  %1734 = vmatprep.subr.mxu0 0.0
  %1735 = vmatpush1.msra.mxu0 0.0
  %1736 = vmatprep.subr.mxu0 0.0
  %1737 = vmatpush1.msra.mxu0 0.0
  %1738 = vmatprep.subr.mxu0 0.0
  %1739 = vmatpush1.msra.mxu0 0.0
  %1740 = vmatprep.subr.mxu0 0.0
  %1741 = vmatpush1.msra.mxu0 0.0
  %1742 = vmatprep.mubr.f32.mxu0 0.0
  %1743 = vmatmul.mubr.f32.gmra.mrb[0].mxu0 %v1534
  %v1744 = vpop.f32.mrb[0].mxu0
  %v1745 = vadd.f32 0.0, %v1744
  %v1746 = vpop.f32.mrb[0].mxu0
  %v1747 = vadd.f32 0.0, %v1746
  %1748 = vdwg.mxu0
  %1749 = vmatprep.subr.mxu0 %v1269
  %1750 = vmatpush1.msra.mxu0 %v1268
  %1751 = vmatprep.subr.mxu0 %v1305
  %1752 = vmatpush1.msra.mxu0 %v1304
  %1753 = vmatprep.subr.mxu0 %v1341
  %1754 = vmatpush1.msra.mxu0 %v1340
  %1755 = vmatprep.subr.mxu0 %v1377
  %1756 = vmatpush1.msra.mxu0 %v1376
  %1757 = vmatprep.subr.mxu0 %v1386
  %1758 = vmatpush1.msra.mxu0 %v1385
  %1759 = vmatprep.subr.mxu0 %v1422
  %1760 = vmatpush1.msra.mxu0 %v1421
  %1761 = vmatprep.subr.mxu0 %v1458
  %1762 = vmatpush1.msra.mxu0 %v1457
  %1763 = vmatprep.subr.mxu0 %v1494
  %1764 = vmatpush1.msra.mxu0 %v1493
  %1765 = vmatprep.subr.mxu0 %v1530
  %1766 = vmatpush1.msra.mxu0 %v1529
  %1767 = vmatprep.subr.mxu0 0.0
  %1768 = vmatpush1.msra.mxu0 0.0
  %1769 = vmatprep.subr.mxu0 0.0
  %1770 = vmatpush1.msra.mxu0 0.0
  %1771 = vmatprep.subr.mxu0 0.0
  %1772 = vmatpush1.msra.mxu0 0.0
  %1773 = vmatprep.subr.mxu0 0.0
  %1774 = vmatpush1.msra.mxu0 0.0
  %1775 = vmatprep.subr.mxu0 0.0
  %1776 = vmatpush1.msra.mxu0 0.0
  %1777 = vmatprep.subr.mxu0 0.0
  %1778 = vmatpush1.msra.mxu0 0.0
  %1779 = vmatprep.subr.mxu0 0.0
  %1780 = vmatpush1.msra.mxu0 0.0
  %1781 = vmatprep.subr.mxu0 0.0
  %1782 = vmatpush1.msra.mxu0 0.0
  %1783 = vmatprep.subr.mxu0 0.0
  %1784 = vmatpush1.msra.mxu0 0.0
  %1785 = vmatprep.subr.mxu0 0.0
  %1786 = vmatpush1.msra.mxu0 0.0
  %1787 = vmatprep.subr.mxu0 0.0
  %1788 = vmatpush1.msra.mxu0 0.0
  %1789 = vmatprep.subr.mxu0 0.0
  %1790 = vmatpush1.msra.mxu0 0.0
  %1791 = vmatprep.subr.mxu0 0.0
  %1792 = vmatpush1.msra.mxu0 0.0
  %1793 = vmatprep.subr.mxu0 0.0
  %1794 = vmatpush1.msra.mxu0 0.0
  %1795 = vmatprep.subr.mxu0 0.0
  %1796 = vmatpush1.msra.mxu0 0.0
  %1797 = vmatprep.subr.mxu0 0.0
  %1798 = vmatpush1.msra.mxu0 0.0
  %1799 = vmatprep.subr.mxu0 0.0
  %1800 = vmatpush1.msra.mxu0 0.0
  %1801 = vmatprep.subr.mxu0 0.0
  %1802 = vmatpush1.msra.mxu0 0.0
  %1803 = vmatprep.subr.mxu0 0.0
  %1804 = vmatpush1.msra.mxu0 0.0
  %1805 = vmatprep.subr.mxu0 0.0
  %1806 = vmatpush1.msra.mxu0 0.0
  %1807 = vmatprep.subr.mxu0 0.0
  %1808 = vmatpush1.msra.mxu0 0.0
  %1809 = vmatprep.subr.mxu0 0.0
  %1810 = vmatpush1.msra.mxu0 0.0
  %1811 = vmatprep.subr.mxu0 0.0
  %1812 = vmatpush1.msra.mxu0 0.0
  %1813 = vmatprep.mubr.f32.mxu0 0.0
  %1814 = vmatmul.mubr.f32.gmra.mrb[0].mxu0 %v1534
  %v1815 = vpop.f32.mrb[0].mxu0
  %v1816 = vadd.f32 0.0, %v1815
  %v1817 = vpop.f32.mrb[0].mxu0
  %v1818 = vadd.f32 0.0, %v1817
  %1819 = vdwg.mxu0
  %1820 = vmatprep.subr.mxu0 0.0
  %1821 = vmatpush1.msra.mxu0 %v1270
  %1822 = vmatprep.subr.mxu0 0.0
  %1823 = vmatpush1.msra.mxu0 %v1306
  %1824 = vmatprep.subr.mxu0 0.0
  %1825 = vmatpush1.msra.mxu0 %v1342
  %1826 = vmatprep.subr.mxu0 0.0
  %1827 = vmatpush1.msra.mxu0 %v1378
  %1828 = vmatprep.subr.mxu0 0.0
  %1829 = vmatpush1.msra.mxu0 %v1387
  %1830 = vmatprep.subr.mxu0 0.0
  %1831 = vmatpush1.msra.mxu0 %v1423
  %1832 = vmatprep.subr.mxu0 0.0
  %1833 = vmatpush1.msra.mxu0 %v1459
  %1834 = vmatprep.subr.mxu0 0.0
  %1835 = vmatpush1.msra.mxu0 %v1495
  %1836 = vmatprep.subr.mxu0 0.0
  %1837 = vmatpush1.msra.mxu0 %v1531
  %1838 = vmatprep.subr.mxu0 0.0
  %1839 = vmatpush1.msra.mxu0 0.0
  %1840 = vmatprep.subr.mxu0 0.0
  %1841 = vmatpush1.msra.mxu0 0.0
  %1842 = vmatprep.subr.mxu0 0.0
  %1843 = vmatpush1.msra.mxu0 0.0
  %1844 = vmatprep.subr.mxu0 0.0
  %1845 = vmatpush1.msra.mxu0 0.0
  %1846 = vmatprep.subr.mxu0 0.0
  %1847 = vmatpush1.msra.mxu0 0.0
  %1848 = vmatprep.subr.mxu0 0.0
  %1849 = vmatpush1.msra.mxu0 0.0
  %1850 = vmatprep.subr.mxu0 0.0
  %1851 = vmatpush1.msra.mxu0 0.0
  %1852 = vmatprep.subr.mxu0 0.0
  %1853 = vmatpush1.msra.mxu0 0.0
  %1854 = vmatprep.subr.mxu0 0.0
  %1855 = vmatpush1.msra.mxu0 0.0
  %1856 = vmatprep.subr.mxu0 0.0
  %1857 = vmatpush1.msra.mxu0 0.0
  %1858 = vmatprep.subr.mxu0 0.0
  %1859 = vmatpush1.msra.mxu0 0.0
  %1860 = vmatprep.subr.mxu0 0.0
  %1861 = vmatpush1.msra.mxu0 0.0
  %1862 = vmatprep.subr.mxu0 0.0
  %1863 = vmatpush1.msra.mxu0 0.0
  %1864 = vmatprep.subr.mxu0 0.0
  %1865 = vmatpush1.msra.mxu0 0.0
  %1866 = vmatprep.subr.mxu0 0.0
  %1867 = vmatpush1.msra.mxu0 0.0
  %1868 = vmatprep.subr.mxu0 0.0
  %1869 = vmatpush1.msra.mxu0 0.0
  %1870 = vmatprep.subr.mxu0 0.0
  %1871 = vmatpush1.msra.mxu0 0.0
  %1872 = vmatprep.subr.mxu0 0.0
  %1873 = vmatpush1.msra.mxu0 0.0
  %1874 = vmatprep.subr.mxu0 0.0
  %1875 = vmatpush1.msra.mxu0 0.0
  %1876 = vmatprep.subr.mxu0 0.0
  %1877 = vmatpush1.msra.mxu0 0.0
  %1878 = vmatprep.subr.mxu0 0.0
  %1879 = vmatpush1.msra.mxu0 0.0
  %1880 = vmatprep.subr.mxu0 0.0
  %1881 = vmatpush1.msra.mxu0 0.0
  %1882 = vmatprep.subr.mxu0 0.0
  %1883 = vmatpush1.msra.mxu0 0.0
  %1884 = vmatprep.mubr.f32.mxu0 0.0
  %1885 = vmatmul.mubr.f32.gmra.mrb[0].mxu0 %v1534
  %v1886 = vpop.f32.mrb[0].mxu0
  %v1887 = vadd.f32 0.0, %v1886
  %v1888 = vpop.f32.mrb[0].mxu0
  %1889 = vdwg.mxu0
  %v1890 = vadd.f32 %v1603, %v1605
  %v1891 = vadd.f32 %v1890, %v1674
  %v1892 = vadd.f32 %v1891, %v1676
  %v1893 = vadd.f32 %v1892, %v1745
  %v1894 = vadd.f32 %v1893, %v1747
  %v1895 = vadd.f32 %v1894, %v1816
  %v1896 = vadd.f32 %v1895, %v1818
  %v1897 = vadd.f32 %v1896, %v1887
  %1898 = vadd.xlane.f32.xlu0 %v1897
  %v1899 = vpop.xlane.xlu0 %1898
  %v1900 = vmul.f32 %v1899, 0.00086805556
  %v1901 = vsub.f32 %v1603, %v1900
  %v1902 = vsub.f32 %v1605, %v1900
  %v1903 = vsub.f32 %v1674, %v1900
  %v1904 = vsub.f32 %v1676, %v1900
  %v1905 = vsub.f32 %v1745, %v1900
  %v1906 = vsub.f32 %v1747, %v1900
  %v1907 = vsub.f32 %v1816, %v1900
  %v1908 = vsub.f32 %v1818, %v1900
  %v1909 = vsub.f32 %v1887, %v1900
  %v1910 = vmul.f32 %v1901, %v1901
  %v1911 = vmul.f32 %v1902, %v1902
  %v1912 = vmul.f32 %v1903, %v1903
  %v1913 = vmul.f32 %v1904, %v1904
  %v1914 = vmul.f32 %v1905, %v1905
  %v1915 = vmul.f32 %v1906, %v1906
  %v1916 = vmul.f32 %v1907, %v1907
  %v1917 = vmul.f32 %v1908, %v1908
  %v1918 = vmul.f32 %v1909, %v1909
  %v1919 = vadd.f32 %v1910, %v1911
  %v1920 = vadd.f32 %v1919, %v1912
  %v1921 = vadd.f32 %v1920, %v1913
  %v1922 = vadd.f32 %v1921, %v1914
  %v1923 = vadd.f32 %v1922, %v1915
  %v1924 = vadd.f32 %v1923, %v1916
  %v1925 = vadd.f32 %v1924, %v1917
  %v1926 = vadd.f32 %v1925, %v1918
  %1927 = vadd.xlane.f32.xlu0 %v1926
  %v1928 = vpop.xlane.xlu0 %1927
  %v1929 = vmul.f32 %v1928, 0.00086805556
  %v1930 = vld [vmem:[%s6] sm:$0xff]
  %v1931 = vadd.f32 %v1929, 1e-05
  %v1932 = vrsqrt.pop %v1931
  %v1933 = vmul.f32 %v1930, %v1932
  %1935 = vset.pattern.permute.xlu0 0
  %1936 = vperm.xlu0 %1935, %v1933
  %v1937 = vpop.permute.xlu0 %1936
  %v1939 = vmul.f32 %v1901, %v1937
  %v1940 = vmul.f32 %v1902, %v1937
  %v1941 = vmul.f32 %v1903, %v1937
  %v1942 = vmul.f32 %v1904, %v1937
  %v1943 = vmul.f32 %v1905, %v1937
  %v1944 = vmul.f32 %v1906, %v1937
  %v1945 = vmul.f32 %v1907, %v1937
  %v1946 = vmul.f32 %v1908, %v1937
  %v1947 = vmul.f32 %v1909, %v1937
  %v1948 = vld [vmem:[%s7] sm:$0xff]
  %1950 = vset.pattern.permute.xlu0 0
  %1951 = vperm.xlu0 %1950, %v1948
  %v1952 = vpop.permute.xlu0 %1951
  %v1954 = vadd.f32 %v1939, %v1952
  %v1955 = vadd.f32 %v1940, %v1952
  %v1956 = vadd.f32 %v1941, %v1952
  %v1957 = vadd.f32 %v1942, %v1952
  %v1958 = vadd.f32 %v1943, %v1952
  %v1959 = vadd.f32 %v1944, %v1952
  %v1960 = vadd.f32 %v1945, %v1952
  %v1961 = vadd.f32 %v1946, %v1952
  %v1962 = vadd.f32 %v1947, %v1952
  %v1963 = vmax.f32 %v1954, 0.0
  %v1964 = vmax.f32 %v1955, 0.0
  %v1965 = vmax.f32 %v1956, 0.0
  %v1966 = vmax.f32 %v1957, 0.0
  %v1967 = vmax.f32 %v1958, 0.0
  %v1968 = vmax.f32 %v1959, 0.0
  %v1969 = vmax.f32 %v1960, 0.0
  %v1970 = vmax.f32 %v1961, 0.0
  %v1971 = vmax.f32 %v1962, 0.0
  %1972 = vst [vmem:[%s8] sm:$0xff] %v1963
  %1973 = vst [vmem:[%s8 + $0x8] sm:$0xff] %v1964
  %1974 = vst [vmem:[%s8 + $0x10] sm:$0xff] %v1965
  %1975 = vst [vmem:[%s8 + $0x18] sm:$0xff] %v1966
  %1976 = vst [vmem:[%s8 + $0x20] sm:$0xff] %v1967
  %1977 = vst [vmem:[%s8 + $0x28] sm:$0xff] %v1968
  %1978 = vst [vmem:[%s8 + $0x30] sm:$0xff] %v1969
  %1979 = vst [vmem:[%s8 + $0x38] sm:$0xff] %v1970
  %1980 = vst [vmem:[%s8 + $0x40] sm:$0xff] %v1971
  // Predicated region
  $region34: #{two_conv_block.1} parent=0 // pred_check
    _
  $region35: #{two_conv_block.1} parent=0 // pred_check_branch
    %1982 = sbr.rel (0) target = $region37
  $region36: #{two_conv_block.1} parent=0 // pred_region
    _
  $region37: #{two_conv_block.1} parent=0 // pred_fallthru
    _
  // Predicated region
  $region38: #{two_conv_block.1} parent=0 // pred_check
    _
  $region39: #{two_conv_block.1} parent=0 // pred_check_branch
    %1984 = sbr.rel (0) target = $region41
  $region40: #{two_conv_block.1} parent=0 // pred_region
    _
  $region41: #{two_conv_block.1} parent=0 // pred_fallthru
    _

</llo_original>
